<compile_context>
chip_gen: v5e
topology: v5e:2x2
jax: 0.10.0
libtpu: 0.0.40
codegen_flags: <defaults>
</compile_context>

<pallas_src>
import functools

import jax
import jax.numpy as jnp
from jax.experimental import pallas as pl
from jax.experimental.pallas import tpu as pltpu


def _ru(x, m):
    return ((x + m - 1) // m) * m


# -----------------------------------------------------------------------------
# Pallas kernel: entire PICNN forward, all weights resident in VMEM.
# HZ / HU / ID are the 128-padded segment widths.
# -----------------------------------------------------------------------------
def _picnn_kernel(num_layer, HZ, HU, ID,
                  x_ref,
                  w1_ref, b1_ref,
                  wu_ref, bu_ref, wz_ref, bz_ref,
                  wuf_ref, buf_ref, wzf_ref, bzf_ref,
                  out_ref):
    relu = lambda a: jnp.maximum(a, 0.0)
    dot = lambda a, w: jnp.dot(a, w, preferred_element_type=jnp.float32)

    x = x_ref[...]                 # (bb, ID + ND)  == [y_pad | u_pad]
    y = x[:, :ID]                  # lane-aligned slice; padded cols are zero

    # ---- first layer: one fused matmul producing [z_pre | u_pre] ----
    h = dot(x, w1_ref[...]) + b1_ref[...]          # (bb, HZ + HU)
    z = relu(h[:, :HZ])                            # activ(Wy1(y) + Wu1(u))
    u = relu(h[:, HZ:])                            # activ(Wt1(u))

    # ---- hidden PICNN blocks: 2 fused matmuls per layer ----
    for l in range(num_layer - 1):
        up = dot(u, wu_ref[l]) + bu_ref[l]         # u @ [Wuz | Wuy | Wt] + biases
        gate = relu(up[:, :HZ])                    # relu(Wuz_positive(u))
        ymod = y * up[:, HZ:HZ + ID]               # y * Wuy_normal(u)
        u_next = relu(up[:, HZ + ID:])             # activ(Wt_normal(u))
        lhs = jnp.concatenate([z * gate, ymod, u], axis=1)   # (bb, HZ+ID+HU)
        z = relu(dot(lhs, wz_ref[l]) + bz_ref[l])  # Wz(z*g) + Wy(ymod) + by + Wu(u)
        u = u_next

    # ---- final layer (no activation on z); gate weights are lane-replicated
    #      across the z segment in the packed slab, so z * gate is elementwise.
    upf = dot(u, wuf_ref[...]) + buf_ref[...]      # u @ [Wuzf_rep | Wuyf] + biases
    gate = relu(upf[:, :HZ])
    ymod = y * upf[:, HZ:]
    lhs = jnp.concatenate([z * gate, ymod, u], axis=1)
    zf = dot(lhs, wzf_ref[...]) + bzf_ref[...]     # (bb, 1)
    # lane-dense store: (bb,1) -> (1,1,bb) so the output row fills full lanes.
    out_ref[...] = jnp.transpose(zf)[None].astype(out_ref.dtype)


# -----------------------------------------------------------------------------
# Parameter construction (deterministic, PyTorch nn.Linear shape conventions):
# raw params mirror the PyTorch module (W stored as (out_features, in_features)).
# -----------------------------------------------------------------------------
def init_params(key, input_dim, num_dist, hidden_u, hidden_z, num_layer):
    def lin(k, out_f, in_f, bias=True):
        kw, kb = jax.random.split(k)
        bound = 1.0 / jnp.sqrt(in_f)
        w = jax.random.uniform(kw, (out_f, in_f), jnp.float32, -bound, bound)
        if bias:
            b = jax.random.uniform(kb, (1, out_f), jnp.float32, -bound, bound)
            return w, b
        return (w,)

    keys = jax.random.split(key, 64)
    ki = iter(range(64))
    params = []
    # first layer
    params += list(lin(keys[next(ki)], hidden_z, input_dim, True))    # Wy1 (w, b)
    params += list(lin(keys[next(ki)], hidden_z, num_dist, False))    # Wu1 (w,)
    params += list(lin(keys[next(ki)], hidden_u, num_dist, True))     # Wt1 (w, b)
    # hidden layers
    for _ in range(num_layer - 1):
        params += list(lin(keys[next(ki)], hidden_z, hidden_z, False))   # Wz_convex
        params += list(lin(keys[next(ki)], hidden_z, hidden_u, True))    # Wuz_positive
        params += list(lin(keys[next(ki)], hidden_z, input_dim, True))   # Wy_normal
        params += list(lin(keys[next(ki)], input_dim, hidden_u, True))   # Wuy_normal
        params += list(lin(keys[next(ki)], hidden_z, hidden_u, False))   # Wu_matrix
        params += list(lin(keys[next(ki)], hidden_u, hidden_u, True))    # Wt_normal
    # final
    params += list(lin(keys[next(ki)], 1, hidden_z, False))           # Wz_final_convex
    params += list(lin(keys[next(ki)], 1, hidden_u, True))            # Wuz_final_positive
    params += list(lin(keys[next(ki)], 1, input_dim, True))           # Wy_final_normal
    params += list(lin(keys[next(ki)], input_dim, hidden_u, True))    # Wuy_final_normal
    params += list(lin(keys[next(ki)], 1, hidden_u, False))           # Wu_final_matrix
    return params


# -----------------------------------------------------------------------------
# Wrapper-side packing: pre-transpose + fuse + 128-lane segment-pad the weights
# into a few slabs (done once).  Padded rows/cols are zero so results match.
# -----------------------------------------------------------------------------
def pack_params(params, input_dim, num_dist, num_layer, hidden_u, hidden_z):
    assert num_layer >= 2, "packing assumes at least one hidden PICNN block"
    p = list(params)
    idx = 0

    def nxt():
        nonlocal idx
        v = p[idx]
        idx += 1
        return v

    Wy1_w, Wy1_b = nxt(), nxt()
    Wu1_w = nxt()
    Wt1_w, Wt1_b = nxt(), nxt()
    layers = [tuple(nxt() for _ in range(10)) for _ in range(num_layer - 1)]
    Wzf_w = nxt()
    Wuzf_w, Wuzf_b = nxt(), nxt()
    Wyf_w, Wyf_b = nxt(), nxt()
    Wuyf_w, Wuyf_b = nxt(), nxt()
    Wuf_w = nxt()

    f32 = jnp.float32
    ID = _ru(input_dim, 128)
    ND = _ru(num_dist, 128)
    HZ = _ru(hidden_z, 128)
    HU = _ru(hidden_u, 128)
    id_, nd, hz, hu = input_dim, num_dist, hidden_z, hidden_u

    # first layer: [y_pad | u_pad] @ w_first -> [z_pre (HZ seg) | u_pre (HU seg)]
    w_first = jnp.zeros((ID + ND, HZ + HU), f32)
    w_first = w_first.at[:id_, :hz].set(Wy1_w.T)
    w_first = w_first.at[ID:ID + nd, :hz].set(Wu1_w.T)
    w_first = w_first.at[ID:ID + nd, HZ:HZ + hu].set(Wt1_w.T)
    b_first = jnp.zeros((1, HZ + HU), f32)
    b_first = b_first.at[:, :hz].set(Wy1_b).at[:, HZ:HZ + hu].set(Wt1_b)

    wu_l, bu_l, wz_l, bz_l = [], [], [], []
    for (Wz_w, Wuz_w, Wuz_b, Wy_w, Wy_b, Wuy_w, Wuy_b, Wu_w, Wt_w, Wt_b) in layers:
        wu = jnp.zeros((HU, HZ + ID + HU), f32)            # u @ [Wuz | Wuy | Wt]
        wu = wu.at[:hu, :hz].set(Wuz_w.T)
        wu = wu.at[:hu, HZ:HZ + id_].set(Wuy_w.T)
        wu = wu.at[:hu, HZ + ID:HZ + ID + hu].set(Wt_w.T)
        bu = jnp.zeros((1, HZ + ID + HU), f32)
        bu = bu.at[:, :hz].set(Wuz_b).at[:, HZ:HZ + id_].set(Wuy_b)
        bu = bu.at[:, HZ + ID:HZ + ID + hu].set(Wt_b)
        wz = jnp.zeros((HZ + ID + HU, HZ), f32)            # [z*g | ymod | u] @ [Wz;Wy;Wu]
        wz = wz.at[:hz, :hz].set(Wz_w.T)
        wz = wz.at[HZ:HZ + id_, :hz].set(Wy_w.T)
        wz = wz.at[HZ + ID:HZ + ID + hu, :hz].set(Wu_w.T)
        bz = jnp.zeros((1, HZ), f32).at[:, :hz].set(Wy_b)
        wu_l.append(wu); bu_l.append(bu); wz_l.append(wz); bz_l.append(bz)
    w_u = jnp.stack(wu_l)   # (L, HU, HZ+ID+HU)
    b_u = jnp.stack(bu_l)   # (L, 1,  HZ+ID+HU)
    w_z = jnp.stack(wz_l)   # (L, HZ+ID+HU, HZ)
    b_z = jnp.stack(bz_l)   # (L, 1,  HZ)

    # final layer: gate weight column replicated across the whole HZ segment so
    # the kernel never broadcasts a (bb, 1) gate over z.
    w_uf = jnp.zeros((HU, HZ + ID), f32)
    w_uf = w_uf.at[:hu, :HZ].set(jnp.tile(Wuzf_w.T, (1, HZ)))
    w_uf = w_uf.at[:hu, HZ:HZ + id_].set(Wuyf_w.T)
    b_uf = jnp.zeros((1, HZ + ID), f32)
    b_uf = b_uf.at[:, :HZ].set(jnp.tile(Wuzf_b, (1, HZ)))
    b_uf = b_uf.at[:, HZ:HZ + id_].set(Wuyf_b)
    w_zf = jnp.zeros((HZ + ID + HU, 1), f32)
    w_zf = w_zf.at[:hz, :].set(Wzf_w.T)
    w_zf = w_zf.at[HZ:HZ + id_, :].set(Wyf_w.T)
    w_zf = w_zf.at[HZ + ID:HZ + ID + hu, :].set(Wuf_w.T)
    b_zf = Wyf_b                                           # (1, 1)

    return (w_first, b_first, w_u, b_u, w_z, b_z, w_uf, b_uf, w_zf, b_zf)


# -----------------------------------------------------------------------------
# Wrapper calling pallas_call.  Batch is zero-padded to a multiple of the batch
# block (grid = cdiv) so the tuned tile size is kept for ragged batches, and the
# "parallel" batch axis can split across TensorCores on multi-core chips.
# -----------------------------------------------------------------------------
def picnn_forward(x, packed, input_dim, num_dist, num_layer, hidden_u, hidden_z,
                  batch_block=1024):
    (w1, b1, wu, bu, wz, bz, wuf, buf_, wzf, bzf) = packed
    ID = _ru(input_dim, 128)
    ND = _ru(num_dist, 128)
    HZ = _ru(hidden_z, 128)
    HU = _ru(hidden_u, 128)

    batch = x.shape[0]
    # y = input[:, :input_dim], u = input[:, -num_dist:]  -- split + segment-pad
    # here (free XLA ops) so the kernel sees lane-aligned operands.
    y = x[:, :input_dim].astype(jnp.float32)
    u0 = x[:, x.shape[1] - num_dist:].astype(jnp.float32)
    xin = jnp.zeros((batch, ID + ND), jnp.float32)
    xin = xin.at[:, :input_dim].set(y).at[:, ID:ID + num_dist].set(u0)

    # batch tiling
    batch_block = max(8, (batch_block // 8) * 8)
    bb = batch_block if batch >= batch_block else _ru(batch, 8)
    n_blocks = pl.cdiv(batch, bb)
    padded_batch = n_blocks * bb
    if padded_batch != batch:
        xin = jnp.pad(xin, ((0, padded_batch - batch), (0, 0)))

    def full_spec(a):
        return pl.BlockSpec(a.shape, lambda i, nd=a.ndim: (0,) * nd)

    in_specs = [
        pl.BlockSpec((bb, ID + ND), lambda i: (i, 0)),     # packed [y|u] input
        full_spec(w1), full_spec(b1),
        full_spec(wu), full_spec(bu),
        full_spec(wz), full_spec(bz),
        full_spec(wuf), full_spec(buf_),
        full_spec(wzf), full_spec(bzf),
    ]
    # lane-dense output: one (1, bb) row per batch block (batch on lane axis).
    out_specs = pl.BlockSpec((1, 1, bb), lambda i: (i, 0, 0))
    out_shape = jax.ShapeDtypeStruct((n_blocks, 1, bb), jnp.float32)

    kernel = functools.partial(_picnn_kernel, num_layer, HZ, HU, ID)
    out = pl.pallas_call(
        kernel,
        out_shape=out_shape,
        grid=(n_blocks,),
        in_specs=in_specs,
        out_specs=out_specs,
        compiler_params=pltpu.CompilerParams(
            dimension_semantics=("parallel",),
            vmem_limit_bytes=32 * 1024 * 1024,
        ),
    )(xin, w1, b1, wu, bu, wz, bz, wuf, buf_, wzf, bzf)
    return out.reshape(padded_batch, 1)[:batch]


# -----------------------------------------------------------------------------
# Pure-JAX reference on the RAW (unpacked, PyTorch-layout) parameters.
# -----------------------------------------------------------------------------
def picnn_reference(x, params, input_dim, num_dist, num_layer):
    p = list(params)
    idx = 0

    def nxt():
        nonlocal idx
        v = p[idx]
        idx += 1
        return v

    Wy1_w, Wy1_b = nxt(), nxt()
    Wu1_w = nxt()
    Wt1_w, Wt1_b = nxt(), nxt()
    layers = [tuple(nxt() for _ in range(10)) for _ in range(num_layer - 1)]
    Wzf_w = nxt()
    Wuzf_w, Wuzf_b = nxt(), nxt()
    Wyf_w, Wyf_b = nxt(), nxt()
    Wuyf_w, Wuyf_b = nxt(), nxt()
    Wuf_w = nxt()

    relu = lambda a: jnp.maximum(a, 0.0)
    y = x[:, :input_dim]
    u = x[:, x.shape[1] - num_dist:]
    z = relu(y @ Wy1_w.T + Wy1_b + u @ Wu1_w.T)
    u = relu(u @ Wt1_w.T + Wt1_b)
    for (Wz_w, Wuz_w, Wuz_b, Wy_w, Wy_b, Wuy_w, Wuy_b, Wu_w, Wt_w, Wt_b) in layers:
        gate = relu(u @ Wuz_w.T + Wuz_b)
        ymod = y * (u @ Wuy_w.T + Wuy_b)
        z = relu((z * gate) @ Wz_w.T + ymod @ Wy_w.T + Wy_b + u @ Wu_w.T)
        u = relu(u @ Wt_w.T + Wt_b)
    gate = relu(u @ Wuzf_w.T + Wuzf_b)
    ymod = y * (u @ Wuyf_w.T + Wuyf_b)
    return (z * gate) @ Wzf_w.T + ymod @ Wyf_w.T + Wyf_b + u @ Wuf_w.T


if __name__ == "__main__":
    # Small, module-consistent shapes
    input_dim = 6
    num_distribution = 4
    hidden_u = 32
    hidden_z = 32
    num_layer = 3

    key = jax.random.PRNGKey(0)
    k_p, k_x1, k_x2 = jax.random.split(key, 3)
    params = init_params(k_p, input_dim, num_distribution,
                         hidden_u, hidden_z, num_layer)
    packed = pack_params(params, input_dim, num_distribution,
                         num_layer, hidden_u, hidden_z)

    # 1) small batch: single block, grid=(1,)
    batch = 8
    x = jax.random.normal(k_x1, (batch, input_dim + num_distribution), jnp.float32)
    out = jax.block_until_ready(
        picnn_forward(x, packed, input_dim, num_distribution, num_layer,
                      hidden_u, hidden_z))
    ref = picnn_reference(x, params, input_dim, num_distribution, num_layer)
    assert out.shape == (batch, 1)
    assert jnp.allclose(out, ref, atol=1e-4, rtol=1e-4), (out, ref)

    # 2) ragged larger batch: exercises the multi-block parallel grid + padding
    batch2 = 300
    x2 = jax.random.normal(k_x2, (batch2, input_dim + num_distribution), jnp.float32)
    out2 = jax.block_until_ready(
        picnn_forward(x2, packed, input_dim, num_distribution, num_layer,
                      hidden_u, hidden_z, batch_block=128))
    ref2 = picnn_reference(x2, params, input_dim, num_distribution, num_layer)
    assert out2.shape == (batch2, 1)
    assert jnp.allclose(out2, ref2, atol=1e-4, rtol=1e-4), (out2, ref2)

    print("KERNEL_OK")
</pallas_src>

<mosaic_0001>
module attributes {stable_mosaic.version = 11 : i64} {
  func.func @_picnn_kernel(%arg0: i32, %arg1: memref<8x256xf32, #tpu.memory_space<vmem>>, %arg2: memref<256x256xf32, #tpu.memory_space<vmem>>, %arg3: memref<1x256xf32, #tpu.memory_space<vmem>>, %arg4: memref<2x128x384xf32, #tpu.memory_space<vmem>>, %arg5: memref<2x1x384xf32, #tpu.memory_space<vmem>>, %arg6: memref<2x384x128xf32, #tpu.memory_space<vmem>>, %arg7: memref<2x1x128xf32, #tpu.memory_space<vmem>>, %arg8: memref<128x256xf32, #tpu.memory_space<vmem>>, %arg9: memref<1x256xf32, #tpu.memory_space<vmem>>, %arg10: memref<384x1xf32, #tpu.memory_space<vmem>>, %arg11: memref<1x1xf32, #tpu.memory_space<vmem>>, %arg12: memref<1x1x8xf32, #tpu.memory_space<vmem>>) attributes {dimension_semantics = [#tpu.dimension_semantics<parallel>], iteration_bounds = array<i64: 1>, scalar_prefetch = 0 : i64, scratch_operands = 0 : i64, tpu.core_type = #tpu.core_type<tc>, window_params = [{transform_indices = @transform_0, window_bounds = array<i64: 8, 256>}, {pipeline_mode = #tpu.pipeline_mode<synchronous>, transform_indices = @transform_1, window_bounds = array<i64: 256, 256>}, {pipeline_mode = #tpu.pipeline_mode<synchronous>, transform_indices = @transform_2, window_bounds = array<i64: 1, 256>}, {pipeline_mode = #tpu.pipeline_mode<synchronous>, transform_indices = @transform_3, window_bounds = array<i64: 2, 128, 384>}, {pipeline_mode = #tpu.pipeline_mode<synchronous>, transform_indices = @transform_4, window_bounds = array<i64: 2, 1, 384>}, {pipeline_mode = #tpu.pipeline_mode<synchronous>, transform_indices = @transform_5, window_bounds = array<i64: 2, 384, 128>}, {pipeline_mode = #tpu.pipeline_mode<synchronous>, transform_indices = @transform_6, window_bounds = array<i64: 2, 1, 128>}, {pipeline_mode = #tpu.pipeline_mode<synchronous>, transform_indices = @transform_7, window_bounds = array<i64: 128, 256>}, {pipeline_mode = #tpu.pipeline_mode<synchronous>, transform_indices = @transform_8, window_bounds = array<i64: 1, 256>}, {pipeline_mode = #tpu.pipeline_mode<synchronous>, transform_indices = @transform_9, window_bounds = array<i64: 384, 1>}, {pipeline_mode = #tpu.pipeline_mode<synchronous>, transform_indices = @transform_10, window_bounds = array<i64: 1, 1>}, {transform_indices = @transform_11, window_bounds = array<i64: 1, 1, 8>}]} {
    %c0 = arith.constant 0 : index
    %c0_0 = arith.constant 0 : index
    %0 = vector.load %arg1[%c0, %c0_0] : memref<8x256xf32, #tpu.memory_space<vmem>>, vector<8x256xf32>
    %1 = vector.extract_strided_slice %0 {offsets = [0, 0], sizes = [8, 128], strides = [1, 1]} : vector<8x256xf32> to vector<8x128xf32>
    %c0_1 = arith.constant 0 : index
    %c0_2 = arith.constant 0 : index
    %2 = vector.load %arg2[%c0_1, %c0_2] : memref<256x256xf32, #tpu.memory_space<vmem>>, vector<256x256xf32>
    %cst = arith.constant dense<0.000000e+00> : vector<8x256xf32>
    %3 = tpu.matmul %0, %2, %cst {dimension_numbers = #tpu.dot_dimension_numbers<[1], [0], [0], [1], [0, 0, 1, 1], [], []>} : vector<8x256xf32>, vector<256x256xf32>, vector<8x256xf32> -> vector<8x256xf32>
    %c0_3 = arith.constant 0 : index
    %c0_4 = arith.constant 0 : index
    %4 = vector.load %arg3[%c0_3, %c0_4] : memref<1x256xf32, #tpu.memory_space<vmem>>, vector<1x256xf32>
    %5 = vector.broadcast %4 : vector<1x256xf32> to vector<8x256xf32>
    %6 = arith.addf %3, %5 : vector<8x256xf32>
    %7 = vector.extract_strided_slice %6 {offsets = [0, 0], sizes = [8, 128], strides = [1, 1]} : vector<8x256xf32> to vector<8x128xf32>
    %cst_5 = arith.constant 0.000000e+00 : f32
    %8 = vector.broadcast %cst_5 : f32 to vector<8x128xf32>
    %9 = arith.maximumf %7, %8 : vector<8x128xf32>
    %10 = vector.extract_strided_slice %6 {offsets = [0, 128], sizes = [8, 128], strides = [1, 1]} : vector<8x256xf32> to vector<8x128xf32>
    %cst_6 = arith.constant 0.000000e+00 : f32
    %11 = vector.broadcast %cst_6 : f32 to vector<8x128xf32>
    %12 = arith.maximumf %10, %11 : vector<8x128xf32>
    %c0_7 = arith.constant 0 : index
    %c0_8 = arith.constant 0 : index
    %c0_9 = arith.constant 0 : index
    %13 = vector.load %arg4[%c0_7, %c0_8, %c0_9] : memref<2x128x384xf32, #tpu.memory_space<vmem>>, vector<1x128x384xf32>
    %14 = vector.shape_cast %13 : vector<1x128x384xf32> to vector<128x384xf32>
    %cst_10 = arith.constant dense<0.000000e+00> : vector<8x384xf32>
    %15 = tpu.matmul %12, %14, %cst_10 {dimension_numbers = #tpu.dot_dimension_numbers<[1], [0], [0], [1], [0, 0, 1, 1], [], []>} : vector<8x128xf32>, vector<128x384xf32>, vector<8x384xf32> -> vector<8x384xf32>
    %c0_11 = arith.constant 0 : index
    %c0_12 = arith.constant 0 : index
    %c0_13 = arith.constant 0 : index
    %16 = vector.load %arg5[%c0_11, %c0_12, %c0_13] : memref<2x1x384xf32, #tpu.memory_space<vmem>>, vector<1x1x384xf32>
    %17 = vector.shape_cast %16 : vector<1x1x384xf32> to vector<1x384xf32>
    %18 = vector.broadcast %17 : vector<1x384xf32> to vector<8x384xf32>
    %19 = arith.addf %15, %18 : vector<8x384xf32>
    %20 = vector.extract_strided_slice %19 {offsets = [0, 0], sizes = [8, 128], strides = [1, 1]} : vector<8x384xf32> to vector<8x128xf32>
    %cst_14 = arith.constant 0.000000e+00 : f32
    %21 = vector.broadcast %cst_14 : f32 to vector<8x128xf32>
    %22 = arith.maximumf %20, %21 : vector<8x128xf32>
    %23 = vector.extract_strided_slice %19 {offsets = [0, 128], sizes = [8, 128], strides = [1, 1]} : vector<8x384xf32> to vector<8x128xf32>
    %24 = arith.mulf %1, %23 : vector<8x128xf32>
    %25 = vector.extract_strided_slice %19 {offsets = [0, 256], sizes = [8, 128], strides = [1, 1]} : vector<8x384xf32> to vector<8x128xf32>
    %cst_15 = arith.constant 0.000000e+00 : f32
    %26 = vector.broadcast %cst_15 : f32 to vector<8x128xf32>
    %27 = arith.maximumf %25, %26 : vector<8x128xf32>
    %28 = arith.mulf %9, %22 : vector<8x128xf32>
    %29 = tpu.concatenate %28, %24, %12 in 1 : vector<8x128xf32>, vector<8x128xf32>, vector<8x128xf32> -> vector<8x384xf32>
    %c0_16 = arith.constant 0 : index
    %c0_17 = arith.constant 0 : index
    %c0_18 = arith.constant 0 : index
    %30 = vector.load %arg6[%c0_16, %c0_17, %c0_18] : memref<2x384x128xf32, #tpu.memory_space<vmem>>, vector<1x384x128xf32>
    %31 = vector.shape_cast %30 : vector<1x384x128xf32> to vector<384x128xf32>
    %cst_19 = arith.constant dense<0.000000e+00> : vector<8x128xf32>
    %32 = tpu.matmul %29, %31, %cst_19 {dimension_numbers = #tpu.dot_dimension_numbers<[1], [0], [0], [1], [0, 0, 1, 1], [], []>} : vector<8x384xf32>, vector<384x128xf32>, vector<8x128xf32> -> vector<8x128xf32>
    %c0_20 = arith.constant 0 : index
    %c0_21 = arith.constant 0 : index
    %c0_22 = arith.constant 0 : index
    %33 = vector.load %arg7[%c0_20, %c0_21, %c0_22] : memref<2x1x128xf32, #tpu.memory_space<vmem>>, vector<1x1x128xf32>
    %34 = vector.shape_cast %33 : vector<1x1x128xf32> to vector<1x128xf32>
    %35 = vector.broadcast %34 : vector<1x128xf32> to vector<8x128xf32>
    %36 = arith.addf %32, %35 : vector<8x128xf32>
    %cst_23 = arith.constant 0.000000e+00 : f32
    %37 = vector.broadcast %cst_23 : f32 to vector<8x128xf32>
    %38 = arith.maximumf %36, %37 : vector<8x128xf32>
    %c1 = arith.constant 1 : index
    %c0_24 = arith.constant 0 : index
    %c0_25 = arith.constant 0 : index
    %39 = vector.load %arg4[%c1, %c0_24, %c0_25] : memref<2x128x384xf32, #tpu.memory_space<vmem>>, vector<1x128x384xf32>
    %40 = vector.shape_cast %39 : vector<1x128x384xf32> to vector<128x384xf32>
    %cst_26 = arith.constant dense<0.000000e+00> : vector<8x384xf32>
    %41 = tpu.matmul %27, %40, %cst_26 {dimension_numbers = #tpu.dot_dimension_numbers<[1], [0], [0], [1], [0, 0, 1, 1], [], []>} : vector<8x128xf32>, vector<128x384xf32>, vector<8x384xf32> -> vector<8x384xf32>
    %c1_27 = arith.constant 1 : index
    %c0_28 = arith.constant 0 : index
    %c0_29 = arith.constant 0 : index
    %42 = vector.load %arg5[%c1_27, %c0_28, %c0_29] : memref<2x1x384xf32, #tpu.memory_space<vmem>>, vector<1x1x384xf32>
    %43 = vector.shape_cast %42 : vector<1x1x384xf32> to vector<1x384xf32>
    %44 = vector.broadcast %43 : vector<1x384xf32> to vector<8x384xf32>
    %45 = arith.addf %41, %44 : vector<8x384xf32>
    %46 = vector.extract_strided_slice %45 {offsets = [0, 0], sizes = [8, 128], strides = [1, 1]} : vector<8x384xf32> to vector<8x128xf32>
    %cst_30 = arith.constant 0.000000e+00 : f32
    %47 = vector.broadcast %cst_30 : f32 to vector<8x128xf32>
    %48 = arith.maximumf %46, %47 : vector<8x128xf32>
    %49 = vector.extract_strided_slice %45 {offsets = [0, 128], sizes = [8, 128], strides = [1, 1]} : vector<8x384xf32> to vector<8x128xf32>
    %50 = arith.mulf %1, %49 : vector<8x128xf32>
    %51 = vector.extract_strided_slice %45 {offsets = [0, 256], sizes = [8, 128], strides = [1, 1]} : vector<8x384xf32> to vector<8x128xf32>
    %cst_31 = arith.constant 0.000000e+00 : f32
    %52 = vector.broadcast %cst_31 : f32 to vector<8x128xf32>
    %53 = arith.maximumf %51, %52 : vector<8x128xf32>
    %54 = arith.mulf %38, %48 : vector<8x128xf32>
    %55 = tpu.concatenate %54, %50, %27 in 1 : vector<8x128xf32>, vector<8x128xf32>, vector<8x128xf32> -> vector<8x384xf32>
    %c1_32 = arith.constant 1 : index
    %c0_33 = arith.constant 0 : index
    %c0_34 = arith.constant 0 : index
    %56 = vector.load %arg6[%c1_32, %c0_33, %c0_34] : memref<2x384x128xf32, #tpu.memory_space<vmem>>, vector<1x384x128xf32>
    %57 = vector.shape_cast %56 : vector<1x384x128xf32> to vector<384x128xf32>
    %cst_35 = arith.constant dense<0.000000e+00> : vector<8x128xf32>
    %58 = tpu.matmul %55, %57, %cst_35 {dimension_numbers = #tpu.dot_dimension_numbers<[1], [0], [0], [1], [0, 0, 1, 1], [], []>} : vector<8x384xf32>, vector<384x128xf32>, vector<8x128xf32> -> vector<8x128xf32>
    %c1_36 = arith.constant 1 : index
    %c0_37 = arith.constant 0 : index
    %c0_38 = arith.constant 0 : index
    %59 = vector.load %arg7[%c1_36, %c0_37, %c0_38] : memref<2x1x128xf32, #tpu.memory_space<vmem>>, vector<1x1x128xf32>
    %60 = vector.shape_cast %59 : vector<1x1x128xf32> to vector<1x128xf32>
    %61 = vector.broadcast %60 : vector<1x128xf32> to vector<8x128xf32>
    %62 = arith.addf %58, %61 : vector<8x128xf32>
    %cst_39 = arith.constant 0.000000e+00 : f32
    %63 = vector.broadcast %cst_39 : f32 to vector<8x128xf32>
    %64 = arith.maximumf %62, %63 : vector<8x128xf32>
    %c0_40 = arith.constant 0 : index
    %c0_41 = arith.constant 0 : index
    %65 = vector.load %arg8[%c0_40, %c0_41] : memref<128x256xf32, #tpu.memory_space<vmem>>, vector<128x256xf32>
    %cst_42 = arith.constant dense<0.000000e+00> : vector<8x256xf32>
    %66 = tpu.matmul %53, %65, %cst_42 {dimension_numbers = #tpu.dot_dimension_numbers<[1], [0], [0], [1], [0, 0, 1, 1], [], []>} : vector<8x128xf32>, vector<128x256xf32>, vector<8x256xf32> -> vector<8x256xf32>
    %c0_43 = arith.constant 0 : index
    %c0_44 = arith.constant 0 : index
    %67 = vector.load %arg9[%c0_43, %c0_44] : memref<1x256xf32, #tpu.memory_space<vmem>>, vector<1x256xf32>
    %68 = vector.broadcast %67 : vector<1x256xf32> to vector<8x256xf32>
    %69 = arith.addf %66, %68 : vector<8x256xf32>
    %70 = vector.extract_strided_slice %69 {offsets = [0, 0], sizes = [8, 128], strides = [1, 1]} : vector<8x256xf32> to vector<8x128xf32>
    %cst_45 = arith.constant 0.000000e+00 : f32
    %71 = vector.broadcast %cst_45 : f32 to vector<8x128xf32>
    %72 = arith.maximumf %70, %71 : vector<8x128xf32>
    %73 = vector.extract_strided_slice %69 {offsets = [0, 128], sizes = [8, 128], strides = [1, 1]} : vector<8x256xf32> to vector<8x128xf32>
    %74 = arith.mulf %1, %73 : vector<8x128xf32>
    %75 = arith.mulf %64, %72 : vector<8x128xf32>
    %76 = tpu.concatenate %75, %74, %53 in 1 : vector<8x128xf32>, vector<8x128xf32>, vector<8x128xf32> -> vector<8x384xf32>
    %c0_46 = arith.constant 0 : index
    %c0_47 = arith.constant 0 : index
    %77 = vector.load %arg10[%c0_46, %c0_47] : memref<384x1xf32, #tpu.memory_space<vmem>>, vector<384x1xf32>
    %cst_48 = arith.constant dense<0.000000e+00> : vector<8x1xf32>
    %78 = tpu.matmul %76, %77, %cst_48 {dimension_numbers = #tpu.dot_dimension_numbers<[1], [0], [0], [1], [0, 0, 1, 1], [], []>} : vector<8x384xf32>, vector<384x1xf32>, vector<8x1xf32> -> vector<8x1xf32>
    %c0_49 = arith.constant 0 : index
    %c0_50 = arith.constant 0 : index
    %79 = vector.load %arg11[%c0_49, %c0_50] : memref<1x1xf32, #tpu.memory_space<vmem>>, vector<1x1xf32>
    %80 = vector.broadcast %79 : vector<1x1xf32> to vector<8x1xf32>
    %81 = arith.addf %78, %80 : vector<8x1xf32>
    %82 = tpu.transpose %81, [1, 0] : vector<8x1xf32> -> vector<1x8xf32>
    %83 = vector.shape_cast %82 : vector<1x8xf32> to vector<1x1x8xf32>
    %c0_51 = arith.constant 0 : index
    %c0_52 = arith.constant 0 : index
    %c0_53 = arith.constant 0 : index
    %84 = vector.load %arg12[%c0_51, %c0_52, %c0_53] : memref<1x1x8xf32, #tpu.memory_space<vmem>>, vector<1x1x8xf32>
    tpu.vector_store %arg12[%c0_51, %c0_52, %c0_53], %83 {strides = array<i32>} : memref<1x1x8xf32, #tpu.memory_space<vmem>>, vector<1x1x8xf32>,
    return
  }
  func.func @transform_0(%arg0: i32) -> (i32, i32) {
    %c0_i32 = arith.constant 0 : i32
    %c0_i32_0 = arith.constant 0 : i32
    return %arg0, %c0_i32 : i32, i32
  }
  func.func @transform_1(%arg0: i32) -> (i32, i32) {
    %c0_i32 = arith.constant 0 : i32
    %c0_i32_0 = arith.constant 0 : i32
    %c0_i32_1 = arith.constant 0 : i32
    return %c0_i32, %c0_i32_0 : i32, i32
  }
  func.func @transform_2(%arg0: i32) -> (i32, i32) {
    %c0_i32 = arith.constant 0 : i32
    %c0_i32_0 = arith.constant 0 : i32
    %c0_i32_1 = arith.constant 0 : i32
    return %c0_i32, %c0_i32_0 : i32, i32
  }
  func.func @transform_3(%arg0: i32) -> (i32, i32, i32) {
    %c0_i32 = arith.constant 0 : i32
    %c0_i32_0 = arith.constant 0 : i32
    %c0_i32_1 = arith.constant 0 : i32
    %c0_i32_2 = arith.constant 0 : i32
    return %c0_i32, %c0_i32_0, %c0_i32_1 : i32, i32, i32
  }
  func.func @transform_4(%arg0: i32) -> (i32, i32, i32) {
    %c0_i32 = arith.constant 0 : i32
    %c0_i32_0 = arith.constant 0 : i32
    %c0_i32_1 = arith.constant 0 : i32
    %c0_i32_2 = arith.constant 0 : i32
    return %c0_i32, %c0_i32_0, %c0_i32_1 : i32, i32, i32
  }
  func.func @transform_5(%arg0: i32) -> (i32, i32, i32) {
    %c0_i32 = arith.constant 0 : i32
    %c0_i32_0 = arith.constant 0 : i32
    %c0_i32_1 = arith.constant 0 : i32
    %c0_i32_2 = arith.constant 0 : i32
    return %c0_i32, %c0_i32_0, %c0_i32_1 : i32, i32, i32
  }
  func.func @transform_6(%arg0: i32) -> (i32, i32, i32) {
    %c0_i32 = arith.constant 0 : i32
    %c0_i32_0 = arith.constant 0 : i32
    %c0_i32_1 = arith.constant 0 : i32
    %c0_i32_2 = arith.constant 0 : i32
    return %c0_i32, %c0_i32_0, %c0_i32_1 : i32, i32, i32
  }
  func.func @transform_7(%arg0: i32) -> (i32, i32) {
    %c0_i32 = arith.constant 0 : i32
    %c0_i32_0 = arith.constant 0 : i32
    %c0_i32_1 = arith.constant 0 : i32
    return %c0_i32, %c0_i32_0 : i32, i32
  }
  func.func @transform_8(%arg0: i32) -> (i32, i32) {
    %c0_i32 = arith.constant 0 : i32
    %c0_i32_0 = arith.constant 0 : i32
    %c0_i32_1 = arith.constant 0 : i32
    return %c0_i32, %c0_i32_0 : i32, i32
  }
  func.func @transform_9(%arg0: i32) -> (i32, i32) {
    %c0_i32 = arith.constant 0 : i32
    %c0_i32_0 = arith.constant 0 : i32
    %c0_i32_1 = arith.constant 0 : i32
    return %c0_i32, %c0_i32_0 : i32, i32
  }
  func.func @transform_10(%arg0: i32) -> (i32, i32) {
    %c0_i32 = arith.constant 0 : i32
    %c0_i32_0 = arith.constant 0 : i32
    %c0_i32_1 = arith.constant 0 : i32
    return %c0_i32, %c0_i32_0 : i32, i32
  }
  func.func @transform_11(%arg0: i32) -> (i32, i32, i32) {
    %c0_i32 = arith.constant 0 : i32
    %c0_i32_0 = arith.constant 0 : i32
    %c0_i32_1 = arith.constant 0 : i32
    return %arg0, %c0_i32, %c0_i32_0 : i32, i32, i32
  }
}

</mosaic_0001>

<llo_original>
// kernel: tpu_custom_call.1
$region0: #{tpu_custom_call.1}
  #allocation0 [shape = 'u32[]', space=smem, size = 0x4, offset = 0x4, fixed_abs, tag = 'smem constant byte address 0x4 - core index']
  #allocation1 [shape = 'u32[72,128]{1,0:T(1,128)}', space=vmem, size = 0x9000, scoped, tag = 'internal scratch']
  #allocation2 [shape = 'f32[1,1]{1,0:T(1,128)S(1)}', space=vmem, size = 0x200, scoped, tag = 'scoped memory for tpu_custom_call.1']
  %s0 = inlined_call_operand.vmem [shape: f32[8,256], index: 0, kind: input, shape index: {}]
  %s1 = inlined_call_operand.hbm [shape: f32[256,256], index: 1, kind: input, shape index: {}]
  %s2 = inlined_call_operand.vmem [shape: f32[1,256], index: 2, kind: input, shape index: {}]
  %s3 = inlined_call_operand.hbm [shape: f32[2,128,384], index: 3, kind: input, shape index: {}]
  %s4 = inlined_call_operand.vmem [shape: f32[2,1,384], index: 4, kind: input, shape index: {}]
  %s5 = inlined_call_operand.hbm [shape: f32[2,384,128], index: 5, kind: input, shape index: {}]
  %s6 = inlined_call_operand.vmem [shape: f32[2,1,128], index: 6, kind: input, shape index: {}]
  %s7 = inlined_call_operand.vmem [shape: f32[128,256], index: 7, kind: input, shape index: {}]
  %s8 = inlined_call_operand.vmem [shape: f32[1,256], index: 8, kind: input, shape index: {}]
  %s9 = inlined_call_operand.vmem [shape: f32[384,1], index: 9, kind: input, shape index: {}]
  %s10 = inlined_call_operand.<no memory space> [shape: f32[1,1], index: 10, kind: input, shape index: {}]
  %s11 = inlined_call_operand.hbm [shape: f32[1,1,8], index: 11, kind: output, shape index: {}]
  %s12 = sld [smem:[#allocation0]]
  $region66: #{tpu_custom_call.1} parent=0
    _
  %s14 = ssub.s32 1, %s12
  %s15 = scalar_select 0, %s14, %s12
  %v16 = vstv %s10
  %17 = vst [vmem:[#allocation2] sm:$0x1] %v16
  $region1: #{tpu_custom_call.1} parent=0
    #allocation3 [shape = 'u8[262144]{0}', space=vmem, size = 0x40000, scoped, tag = 'input window, operand 1, single buffered']
    #allocation4 [shape = 's32[1]{0}', space=sflag, size = 0x4, scoped, tag = 'scoped memory for tpu_custom_call.1']
    #allocation5 [shape = 's32[1]{0}', space=sflag, size = 0x4, scoped, tag = 'scoped memory for tpu_custom_call.1']
    #allocation6 [shape = 'u8[393216]{0}', space=vmem, size = 0x60000, scoped, tag = 'input window, operand 3, single buffered']
    #allocation7 [shape = 's32[1]{0}', space=sflag, size = 0x4, scoped, tag = 'scoped memory for tpu_custom_call.1']
    #allocation8 [shape = 'u8[393216]{0}', space=vmem, size = 0x60000, scoped, tag = 'input window, operand 5, single buffered']
    #allocation9 [shape = 'u8[512]{0}', space=vmem, size = 0x400, scoped, tag = 'output window, operand 0, single buffered']
    %18 = vsyncpa [#allocation4], 0
    %19 = vsyncpa [#allocation7], 0
    %20 = vsyncpa [#allocation5], 0
    // Predicated region
    $region2: #{tpu_custom_call.1} parent=1 // pred_check
      _
    $region3: #{tpu_custom_call.1} parent=1 // pred_check_branch
      %22 = sbr.rel (0) target = $region5
    $region4: #{tpu_custom_call.1} parent=1 // pred_region
      _
    $region5: #{tpu_custom_call.1} parent=1 // pred_fallthru
      _
    // Predicated region
    $region6: #{tpu_custom_call.1} parent=1 // pred_check
      _
    $region7: #{tpu_custom_call.1} parent=1 // pred_check_branch
      %24 = sbr.rel (0) target = $region9
    $region8: #{tpu_custom_call.1} parent=1 // pred_region
      %26 = vsyncadd [#allocation4], 0
      %s27 = sshll.u32 %s1, 4
      %s28 = int_to_ptr.hbm [resolvable:$true] %s27
      %s29 = sshll.u32 [#allocation3], 4
      %s30 = int_to_ptr.vmem [resolvable:$true] %s29
      %35 = dma.hbm_to_vmem [thread:$0]  %s28, 8192, %s30, [#allocation4], 256, 256, 16
    $region9: #{tpu_custom_call.1} parent=1 // pred_fallthru
      _
    // Predicated region
    $region10: #{tpu_custom_call.1} parent=1 // pred_check
      _
    $region11: #{tpu_custom_call.1} parent=1 // pred_check_branch
      %37 = sbr.rel (0) target = $region13
    $region12: #{tpu_custom_call.1} parent=1 // pred_region
      _
    $region13: #{tpu_custom_call.1} parent=1 // pred_fallthru
      _
    // Predicated region
    $region14: #{tpu_custom_call.1} parent=1 // pred_check
      _
    $region15: #{tpu_custom_call.1} parent=1 // pred_check_branch
      %39 = sbr.rel (0) target = $region17
    $region16: #{tpu_custom_call.1} parent=1 // pred_region
      %41 = vsyncadd [#allocation7], 0
      %s42 = sshll.u32 %s3, 4
      %s43 = int_to_ptr.hbm [resolvable:$true] %s42
      %s44 = sshll.u32 [#allocation6], 4
      %s45 = int_to_ptr.vmem [resolvable:$true] %s44
      %50 = dma.hbm_to_vmem [thread:$0]  %s43, 12288, %s45, [#allocation7], 384, 384, 24
    $region17: #{tpu_custom_call.1} parent=1 // pred_fallthru
      _
    // Predicated region
    $region18: #{tpu_custom_call.1} parent=1 // pred_check
      _
    $region19: #{tpu_custom_call.1} parent=1 // pred_check_branch
      %52 = sbr.rel (0) target = $region21
    $region20: #{tpu_custom_call.1} parent=1 // pred_region
      _
    $region21: #{tpu_custom_call.1} parent=1 // pred_fallthru
      _
    // Predicated region
    $region22: #{tpu_custom_call.1} parent=1 // pred_check
      _
    $region23: #{tpu_custom_call.1} parent=1 // pred_check_branch
      %54 = sbr.rel (0) target = $region25
    $region24: #{tpu_custom_call.1} parent=1 // pred_region
      %56 = vsyncadd [#allocation7], 0
      %s57 = sshll.u32 %s5, 4
      %s58 = int_to_ptr.hbm [resolvable:$true] %s57
      %s59 = sshll.u32 [#allocation8], 4
      %s60 = int_to_ptr.vmem [resolvable:$true] %s59
      %65 = dma.hbm_to_vmem [thread:$0]  %s58, 12288, %s60, [#allocation7], 128, 128, 8
    $region25: #{tpu_custom_call.1} parent=1 // pred_fallthru
      _
    // Predicated region
    $region26: #{tpu_custom_call.1} parent=1 // pred_check
      _
    $region27: #{tpu_custom_call.1} parent=1 // pred_check_branch
      %67 = sbr.rel (0) target = $region29
    $region28: #{tpu_custom_call.1} parent=1 // pred_region
      _
    $region29: #{tpu_custom_call.1} parent=1 // pred_fallthru
      _
    // Predicated region
    $region30: #{tpu_custom_call.1} parent=1 // pred_check
      _
    $region31: #{tpu_custom_call.1} parent=1 // pred_check_branch
      %69 = sbr.rel (0) target = $region33
    $region32: #{tpu_custom_call.1} parent=1 // pred_region
      _
    $region33: #{tpu_custom_call.1} parent=1 // pred_fallthru
      _
    // Predicated region
    $region34: #{tpu_custom_call.1} parent=1 // pred_check
      _
    $region35: #{tpu_custom_call.1} parent=1 // pred_check_branch
      %71 = sbr.rel (0) target = $region37
    $region36: #{tpu_custom_call.1} parent=1 // pred_region
      _
    $region37: #{tpu_custom_call.1} parent=1 // pred_fallthru
      _
    // Predicated region
    $region38: #{tpu_custom_call.1} parent=1 // pred_check
      _
    $region39: #{tpu_custom_call.1} parent=1 // pred_check_branch
      %73 = sbr.rel (0) target = $region41
    $region40: #{tpu_custom_call.1} parent=1 // pred_region
      _
    $region41: #{tpu_custom_call.1} parent=1 // pred_fallthru
      _
    // Predicated region
    $region42: #{tpu_custom_call.1} parent=1 // pred_check
      _
    $region43: #{tpu_custom_call.1} parent=1 // pred_check_branch
      %75 = sbr.rel (0) target = $region45
    $region44: #{tpu_custom_call.1} parent=1 // pred_region
      _
    $region45: #{tpu_custom_call.1} parent=1 // pred_fallthru
      _
    // Predicated region
    $region46: #{tpu_custom_call.1} parent=1 // pred_check
      _
    $region47: #{tpu_custom_call.1} parent=1 // pred_check_branch
      %77 = sbr.rel (0) target = $region49
    $region48: #{tpu_custom_call.1} parent=1 // pred_region
      %79 = dma.done [#allocation4], 8192
    $region49: #{tpu_custom_call.1} parent=1 // pred_fallthru
      _
    // Predicated region
    $region50: #{tpu_custom_call.1} parent=1 // pred_check
      _
    $region51: #{tpu_custom_call.1} parent=1 // pred_check_branch
      %81 = sbr.rel (0) target = $region53
    $region52: #{tpu_custom_call.1} parent=1 // pred_region
      %83 = dma.done [#allocation7], 12288
    $region53: #{tpu_custom_call.1} parent=1 // pred_fallthru
      _
    // Predicated region
    $region54: #{tpu_custom_call.1} parent=1 // pred_check
      _
    $region55: #{tpu_custom_call.1} parent=1 // pred_check_branch
      %85 = sbr.rel (0) target = $region57
    $region56: #{tpu_custom_call.1} parent=1 // pred_region
      %87 = dma.done [#allocation7], 12288
    $region57: #{tpu_custom_call.1} parent=1 // pred_fallthru
      _
    %v88 = vld [vmem:[%s0] sm:$0xff]
    %v89 = vld [vmem:[%s0 + $0x8] sm:$0xff]
    %v90 = vld [vmem:[#allocation3] sm:$0xff]
    %v91 = vld [vmem:[#allocation3 + $0x8] sm:$0xff]
    %v92 = vld [vmem:[#allocation3 + $0x10] sm:$0xff]
    %v93 = vld [vmem:[#allocation3 + $0x18] sm:$0xff]
    %v94 = vld [vmem:[#allocation3 + $0x20] sm:$0xff]
    %v95 = vld [vmem:[#allocation3 + $0x28] sm:$0xff]
    %v96 = vld [vmem:[#allocation3 + $0x30] sm:$0xff]
    %v97 = vld [vmem:[#allocation3 + $0x38] sm:$0xff]
    %v98 = vld [vmem:[#allocation3 + $0x40] sm:$0xff]
    %v99 = vld [vmem:[#allocation3 + $0x48] sm:$0xff]
    %v100 = vld [vmem:[#allocation3 + $0x50] sm:$0xff]
    %v101 = vld [vmem:[#allocation3 + $0x58] sm:$0xff]
    %v102 = vld [vmem:[#allocation3 + $0x60] sm:$0xff]
    %v103 = vld [vmem:[#allocation3 + $0x68] sm:$0xff]
    %v104 = vld [vmem:[#allocation3 + $0x70] sm:$0xff]
    %v105 = vld [vmem:[#allocation3 + $0x78] sm:$0xff]
    %v106 = vld [vmem:[#allocation3 + $0x80] sm:$0xff]
    %v107 = vld [vmem:[#allocation3 + $0x88] sm:$0xff]
    %v108 = vld [vmem:[#allocation3 + $0x90] sm:$0xff]
    %v109 = vld [vmem:[#allocation3 + $0x98] sm:$0xff]
    %v110 = vld [vmem:[#allocation3 + $0xa0] sm:$0xff]
    %v111 = vld [vmem:[#allocation3 + $0xa8] sm:$0xff]
    %v112 = vld [vmem:[#allocation3 + $0xb0] sm:$0xff]
    %v113 = vld [vmem:[#allocation3 + $0xb8] sm:$0xff]
    %v114 = vld [vmem:[#allocation3 + $0xc0] sm:$0xff]
    %v115 = vld [vmem:[#allocation3 + $0xc8] sm:$0xff]
    %v116 = vld [vmem:[#allocation3 + $0xd0] sm:$0xff]
    %v117 = vld [vmem:[#allocation3 + $0xd8] sm:$0xff]
    %v118 = vld [vmem:[#allocation3 + $0xe0] sm:$0xff]
    %v119 = vld [vmem:[#allocation3 + $0xe8] sm:$0xff]
    %v120 = vld [vmem:[#allocation3 + $0xf0] sm:$0xff]
    %v121 = vld [vmem:[#allocation3 + $0xf8] sm:$0xff]
    %v122 = vld [vmem:[#allocation3 + $0x100] sm:$0xff]
    %v123 = vld [vmem:[#allocation3 + $0x108] sm:$0xff]
    %v124 = vld [vmem:[#allocation3 + $0x110] sm:$0xff]
    %v125 = vld [vmem:[#allocation3 + $0x118] sm:$0xff]
    %v126 = vld [vmem:[#allocation3 + $0x120] sm:$0xff]
    %v127 = vld [vmem:[#allocation3 + $0x128] sm:$0xff]
    %v128 = vld [vmem:[#allocation3 + $0x130] sm:$0xff]
    %v129 = vld [vmem:[#allocation3 + $0x138] sm:$0xff]
    %v130 = vld [vmem:[#allocation3 + $0x140] sm:$0xff]
    %v131 = vld [vmem:[#allocation3 + $0x148] sm:$0xff]
    %v132 = vld [vmem:[#allocation3 + $0x150] sm:$0xff]
    %v133 = vld [vmem:[#allocation3 + $0x158] sm:$0xff]
    %v134 = vld [vmem:[#allocation3 + $0x160] sm:$0xff]
    %v135 = vld [vmem:[#allocation3 + $0x168] sm:$0xff]
    %v136 = vld [vmem:[#allocation3 + $0x170] sm:$0xff]
    %v137 = vld [vmem:[#allocation3 + $0x178] sm:$0xff]
    %v138 = vld [vmem:[#allocation3 + $0x180] sm:$0xff]
    %v139 = vld [vmem:[#allocation3 + $0x188] sm:$0xff]
    %v140 = vld [vmem:[#allocation3 + $0x190] sm:$0xff]
    %v141 = vld [vmem:[#allocation3 + $0x198] sm:$0xff]
    %v142 = vld [vmem:[#allocation3 + $0x1a0] sm:$0xff]
    %v143 = vld [vmem:[#allocation3 + $0x1a8] sm:$0xff]
    %v144 = vld [vmem:[#allocation3 + $0x1b0] sm:$0xff]
    %v145 = vld [vmem:[#allocation3 + $0x1b8] sm:$0xff]
    %v146 = vld [vmem:[#allocation3 + $0x1c0] sm:$0xff]
    %v147 = vld [vmem:[#allocation3 + $0x1c8] sm:$0xff]
    %v148 = vld [vmem:[#allocation3 + $0x1d0] sm:$0xff]
    %v149 = vld [vmem:[#allocation3 + $0x1d8] sm:$0xff]
    %v150 = vld [vmem:[#allocation3 + $0x1e0] sm:$0xff]
    %v151 = vld [vmem:[#allocation3 + $0x1e8] sm:$0xff]
    %v152 = vld [vmem:[#allocation3 + $0x1f0] sm:$0xff]
    %v153 = vld [vmem:[#allocation3 + $0x1f8] sm:$0xff]
    %v154 = vld [vmem:[%s2] sm:$0x3]
    %v156 = vperm.slane %v154, 0
    %v157 = vperm.slane %v154, 1
    %160 = vmatpush.msra.mxu0 %v120
    %161 = vmatpush.msra.mxu0 %v118
    %162 = vmatpush.msra.mxu0 %v116
    %163 = vmatpush.msra.mxu0 %v114
    %164 = vmatpush.msra.mxu0 %v112
    %165 = vmatpush.msra.mxu0 %v110
    %166 = vmatpush.msra.mxu0 %v108
    %167 = vmatpush.msra.mxu0 %v106
    %168 = vmatpush.msra.mxu0 %v104
    %169 = vmatpush.msra.mxu0 %v102
    %170 = vmatpush.msra.mxu0 %v100
    %171 = vmatpush.msra.mxu0 %v98
    %172 = vmatpush.msra.mxu0 %v96
    %173 = vmatpush.msra.mxu0 %v94
    %174 = vmatpush.msra.mxu0 %v92
    %175 = vmatpush.msra.mxu0 %v90
    %176 = vmatmul.f32.gmra.mxu0 %v88
    %v177 = vpop.f32.mrf.mxu0
    %v178 = vadd.f32 %v156, %v177
    %179 = vdwg.mxu0
    %180 = vmatpush.msra.mxu0 %v152
    %181 = vmatpush.msra.mxu0 %v150
    %182 = vmatpush.msra.mxu0 %v148
    %183 = vmatpush.msra.mxu0 %v146
    %184 = vmatpush.msra.mxu0 %v144
    %185 = vmatpush.msra.mxu0 %v142
    %186 = vmatpush.msra.mxu0 %v140
    %187 = vmatpush.msra.mxu0 %v138
    %188 = vmatpush.msra.mxu0 %v136
    %189 = vmatpush.msra.mxu0 %v134
    %190 = vmatpush.msra.mxu0 %v132
    %191 = vmatpush.msra.mxu0 %v130
    %192 = vmatpush.msra.mxu0 %v128
    %193 = vmatpush.msra.mxu0 %v126
    %194 = vmatpush.msra.mxu0 %v124
    %195 = vmatpush.msra.mxu0 %v122
    %196 = vmatmul.f32.gmra.mxu0 %v89
    %v197 = vpop.f32.mrf.mxu0
    %v198 = vadd.f32 %v178, %v197
    %199 = vdwg.mxu0
    %200 = vmatpush.msra.mxu0 %v121
    %201 = vmatpush.msra.mxu0 %v119
    %202 = vmatpush.msra.mxu0 %v117
    %203 = vmatpush.msra.mxu0 %v115
    %204 = vmatpush.msra.mxu0 %v113
    %205 = vmatpush.msra.mxu0 %v111
    %206 = vmatpush.msra.mxu0 %v109
    %207 = vmatpush.msra.mxu0 %v107
    %208 = vmatpush.msra.mxu0 %v105
    %209 = vmatpush.msra.mxu0 %v103
    %210 = vmatpush.msra.mxu0 %v101
    %211 = vmatpush.msra.mxu0 %v99
    %212 = vmatpush.msra.mxu0 %v97
    %213 = vmatpush.msra.mxu0 %v95
    %214 = vmatpush.msra.mxu0 %v93
    %215 = vmatpush.msra.mxu0 %v91
    %216 = vmatmul.f32.gmra.mxu0 %v88
    %v217 = vpop.f32.mrf.mxu0
    %v218 = vadd.f32 %v157, %v217
    %219 = vdwg.mxu0
    %220 = vmatpush.msra.mxu0 %v153
    %221 = vmatpush.msra.mxu0 %v151
    %222 = vmatpush.msra.mxu0 %v149
    %223 = vmatpush.msra.mxu0 %v147
    %224 = vmatpush.msra.mxu0 %v145
    %225 = vmatpush.msra.mxu0 %v143
    %226 = vmatpush.msra.mxu0 %v141
    %227 = vmatpush.msra.mxu0 %v139
    %228 = vmatpush.msra.mxu0 %v137
    %229 = vmatpush.msra.mxu0 %v135
    %230 = vmatpush.msra.mxu0 %v133
    %231 = vmatpush.msra.mxu0 %v131
    %232 = vmatpush.msra.mxu0 %v129
    %233 = vmatpush.msra.mxu0 %v127
    %234 = vmatpush.msra.mxu0 %v125
    %235 = vmatpush.msra.mxu0 %v123
    %236 = vmatmul.f32.gmra.mxu0 %v89
    %v237 = vpop.f32.mrf.mxu0
    %v238 = vadd.f32 %v218, %v237
    %239 = vdwg.mxu0
    %v240 = vmax.f32 %v198, 0.0
    %v241 = vmax.f32 %v238, 0.0
    %v242 = vld [vmem:[#allocation6] sm:$0xff]
    %v243 = vld [vmem:[#allocation6 + $0x8] sm:$0xff]
    %v244 = vld [vmem:[#allocation6 + $0x10] sm:$0xff]
    %v245 = vld [vmem:[#allocation6 + $0x18] sm:$0xff]
    %v246 = vld [vmem:[#allocation6 + $0x20] sm:$0xff]
    %v247 = vld [vmem:[#allocation6 + $0x28] sm:$0xff]
    %v248 = vld [vmem:[#allocation6 + $0x30] sm:$0xff]
    %v249 = vld [vmem:[#allocation6 + $0x38] sm:$0xff]
    %v250 = vld [vmem:[#allocation6 + $0x40] sm:$0xff]
    %v251 = vld [vmem:[#allocation6 + $0x48] sm:$0xff]
    %v252 = vld [vmem:[#allocation6 + $0x50] sm:$0xff]
    %v253 = vld [vmem:[#allocation6 + $0x58] sm:$0xff]
    %v254 = vld [vmem:[#allocation6 + $0x60] sm:$0xff]
    %v255 = vld [vmem:[#allocation6 + $0x68] sm:$0xff]
    %v256 = vld [vmem:[#allocation6 + $0x70] sm:$0xff]
    %v257 = vld [vmem:[#allocation6 + $0x78] sm:$0xff]
    %v258 = vld [vmem:[#allocation6 + $0x80] sm:$0xff]
    %v259 = vld [vmem:[#allocation6 + $0x88] sm:$0xff]
    %v260 = vld [vmem:[#allocation6 + $0x90] sm:$0xff]
    %v261 = vld [vmem:[#allocation6 + $0x98] sm:$0xff]
    %v262 = vld [vmem:[#allocation6 + $0xa0] sm:$0xff]
    %v263 = vld [vmem:[#allocation6 + $0xa8] sm:$0xff]
    %v264 = vld [vmem:[#allocation6 + $0xb0] sm:$0xff]
    %v265 = vld [vmem:[#allocation6 + $0xb8] sm:$0xff]
    %v266 = vld [vmem:[#allocation6 + $0xc0] sm:$0xff]
    %v267 = vld [vmem:[#allocation6 + $0xc8] sm:$0xff]
    %v268 = vld [vmem:[#allocation6 + $0xd0] sm:$0xff]
    %v269 = vld [vmem:[#allocation6 + $0xd8] sm:$0xff]
    %v270 = vld [vmem:[#allocation6 + $0xe0] sm:$0xff]
    %v271 = vld [vmem:[#allocation6 + $0xe8] sm:$0xff]
    %v272 = vld [vmem:[#allocation6 + $0xf0] sm:$0xff]
    %v273 = vld [vmem:[#allocation6 + $0xf8] sm:$0xff]
    %v274 = vld [vmem:[#allocation6 + $0x100] sm:$0xff]
    %v275 = vld [vmem:[#allocation6 + $0x108] sm:$0xff]
    %v276 = vld [vmem:[#allocation6 + $0x110] sm:$0xff]
    %v277 = vld [vmem:[#allocation6 + $0x118] sm:$0xff]
    %v278 = vld [vmem:[#allocation6 + $0x120] sm:$0xff]
    %v279 = vld [vmem:[#allocation6 + $0x128] sm:$0xff]
    %v280 = vld [vmem:[#allocation6 + $0x130] sm:$0xff]
    %v281 = vld [vmem:[#allocation6 + $0x138] sm:$0xff]
    %v282 = vld [vmem:[#allocation6 + $0x140] sm:$0xff]
    %v283 = vld [vmem:[#allocation6 + $0x148] sm:$0xff]
    %v284 = vld [vmem:[#allocation6 + $0x150] sm:$0xff]
    %v285 = vld [vmem:[#allocation6 + $0x158] sm:$0xff]
    %v286 = vld [vmem:[#allocation6 + $0x160] sm:$0xff]
    %v287 = vld [vmem:[#allocation6 + $0x168] sm:$0xff]
    %v288 = vld [vmem:[#allocation6 + $0x170] sm:$0xff]
    %v289 = vld [vmem:[#allocation6 + $0x178] sm:$0xff]
    %v290 = vld [vmem:[%s4] sm:$0x7]
    %v292 = vperm.slane %v290, 0
    %v293 = vperm.slane %v290, 1
    %v294 = vperm.slane %v290, 2
    %298 = vmatpush.msra.mxu0 %v287
    %299 = vmatpush.msra.mxu0 %v284
    %300 = vmatpush.msra.mxu0 %v281
    %301 = vmatpush.msra.mxu0 %v278
    %302 = vmatpush.msra.mxu0 %v275
    %303 = vmatpush.msra.mxu0 %v272
    %304 = vmatpush.msra.mxu0 %v269
    %305 = vmatpush.msra.mxu0 %v266
    %306 = vmatpush.msra.mxu0 %v263
    %307 = vmatpush.msra.mxu0 %v260
    %308 = vmatpush.msra.mxu0 %v257
    %309 = vmatpush.msra.mxu0 %v254
    %310 = vmatpush.msra.mxu0 %v251
    %311 = vmatpush.msra.mxu0 %v248
    %312 = vmatpush.msra.mxu0 %v245
    %313 = vmatpush.msra.mxu0 %v242
    %314 = vmatmul.f32.gmra.mxu0 %v241
    %v315 = vpop.f32.mrf.mxu0
    %v316 = vadd.f32 %v292, %v315
    %317 = vdwg.mxu0
    %318 = vmatpush.msra.mxu0 %v288
    %319 = vmatpush.msra.mxu0 %v285
    %320 = vmatpush.msra.mxu0 %v282
    %321 = vmatpush.msra.mxu0 %v279
    %322 = vmatpush.msra.mxu0 %v276
    %323 = vmatpush.msra.mxu0 %v273
    %324 = vmatpush.msra.mxu0 %v270
    %325 = vmatpush.msra.mxu0 %v267
    %326 = vmatpush.msra.mxu0 %v264
    %327 = vmatpush.msra.mxu0 %v261
    %328 = vmatpush.msra.mxu0 %v258
    %329 = vmatpush.msra.mxu0 %v255
    %330 = vmatpush.msra.mxu0 %v252
    %331 = vmatpush.msra.mxu0 %v249
    %332 = vmatpush.msra.mxu0 %v246
    %333 = vmatpush.msra.mxu0 %v243
    %334 = vmatmul.f32.gmra.mxu0 %v241
    %v335 = vpop.f32.mrf.mxu0
    %v336 = vadd.f32 %v293, %v335
    %337 = vdwg.mxu0
    %338 = vmatpush.msra.mxu0 %v289
    %339 = vmatpush.msra.mxu0 %v286
    %340 = vmatpush.msra.mxu0 %v283
    %341 = vmatpush.msra.mxu0 %v280
    %342 = vmatpush.msra.mxu0 %v277
    %343 = vmatpush.msra.mxu0 %v274
    %344 = vmatpush.msra.mxu0 %v271
    %345 = vmatpush.msra.mxu0 %v268
    %346 = vmatpush.msra.mxu0 %v265
    %347 = vmatpush.msra.mxu0 %v262
    %348 = vmatpush.msra.mxu0 %v259
    %349 = vmatpush.msra.mxu0 %v256
    %350 = vmatpush.msra.mxu0 %v253
    %351 = vmatpush.msra.mxu0 %v250
    %352 = vmatpush.msra.mxu0 %v247
    %353 = vmatpush.msra.mxu0 %v244
    %354 = vmatmul.f32.gmra.mxu0 %v241
    %v355 = vpop.f32.mrf.mxu0
    %v356 = vadd.f32 %v294, %v355
    %357 = vdwg.mxu0
    %v358 = vmax.f32 %v316, 0.0
    %v359 = vmul.f32 %v88, %v336
    %v360 = vmax.f32 %v356, 0.0
    %v361 = vmul.f32 %v240, %v358
    %v362 = vld [vmem:[#allocation8] sm:$0xff]
    %v363 = vld [vmem:[#allocation8 + $0x8] sm:$0xff]
    %v364 = vld [vmem:[#allocation8 + $0x10] sm:$0xff]
    %v365 = vld [vmem:[#allocation8 + $0x18] sm:$0xff]
    %v366 = vld [vmem:[#allocation8 + $0x20] sm:$0xff]
    %v367 = vld [vmem:[#allocation8 + $0x28] sm:$0xff]
    %v368 = vld [vmem:[#allocation8 + $0x30] sm:$0xff]
    %v369 = vld [vmem:[#allocation8 + $0x38] sm:$0xff]
    %v370 = vld [vmem:[#allocation8 + $0x40] sm:$0xff]
    %v371 = vld [vmem:[#allocation8 + $0x48] sm:$0xff]
    %v372 = vld [vmem:[#allocation8 + $0x50] sm:$0xff]
    %v373 = vld [vmem:[#allocation8 + $0x58] sm:$0xff]
    %v374 = vld [vmem:[#allocation8 + $0x60] sm:$0xff]
    %v375 = vld [vmem:[#allocation8 + $0x68] sm:$0xff]
    %v376 = vld [vmem:[#allocation8 + $0x70] sm:$0xff]
    %v377 = vld [vmem:[#allocation8 + $0x78] sm:$0xff]
    %v378 = vld [vmem:[#allocation8 + $0x80] sm:$0xff]
    %v379 = vld [vmem:[#allocation8 + $0x88] sm:$0xff]
    %v380 = vld [vmem:[#allocation8 + $0x90] sm:$0xff]
    %v381 = vld [vmem:[#allocation8 + $0x98] sm:$0xff]
    %v382 = vld [vmem:[#allocation8 + $0xa0] sm:$0xff]
    %v383 = vld [vmem:[#allocation8 + $0xa8] sm:$0xff]
    %v384 = vld [vmem:[#allocation8 + $0xb0] sm:$0xff]
    %v385 = vld [vmem:[#allocation8 + $0xb8] sm:$0xff]
    %v386 = vld [vmem:[#allocation8 + $0xc0] sm:$0xff]
    %v387 = vld [vmem:[#allocation8 + $0xc8] sm:$0xff]
    %v388 = vld [vmem:[#allocation8 + $0xd0] sm:$0xff]
    %v389 = vld [vmem:[#allocation8 + $0xd8] sm:$0xff]
    %v390 = vld [vmem:[#allocation8 + $0xe0] sm:$0xff]
    %v391 = vld [vmem:[#allocation8 + $0xe8] sm:$0xff]
    %v392 = vld [vmem:[#allocation8 + $0xf0] sm:$0xff]
    %v393 = vld [vmem:[#allocation8 + $0xf8] sm:$0xff]
    %v394 = vld [vmem:[#allocation8 + $0x100] sm:$0xff]
    %v395 = vld [vmem:[#allocation8 + $0x108] sm:$0xff]
    %v396 = vld [vmem:[#allocation8 + $0x110] sm:$0xff]
    %v397 = vld [vmem:[#allocation8 + $0x118] sm:$0xff]
    %v398 = vld [vmem:[#allocation8 + $0x120] sm:$0xff]
    %v399 = vld [vmem:[#allocation8 + $0x128] sm:$0xff]
    %v400 = vld [vmem:[#allocation8 + $0x130] sm:$0xff]
    %v401 = vld [vmem:[#allocation8 + $0x138] sm:$0xff]
    %v402 = vld [vmem:[#allocation8 + $0x140] sm:$0xff]
    %v403 = vld [vmem:[#allocation8 + $0x148] sm:$0xff]
    %v404 = vld [vmem:[#allocation8 + $0x150] sm:$0xff]
    %v405 = vld [vmem:[#allocation8 + $0x158] sm:$0xff]
    %v406 = vld [vmem:[#allocation8 + $0x160] sm:$0xff]
    %v407 = vld [vmem:[#allocation8 + $0x168] sm:$0xff]
    %v408 = vld [vmem:[#allocation8 + $0x170] sm:$0xff]
    %v409 = vld [vmem:[#allocation8 + $0x178] sm:$0xff]
    %v410 = vld [vmem:[%s6] sm:$0x1]
    %v412 = vperm.slane %v410, 0
    %414 = vmatpush.msra.mxu0 %v377
    %415 = vmatpush.msra.mxu0 %v376
    %416 = vmatpush.msra.mxu0 %v375
    %417 = vmatpush.msra.mxu0 %v374
    %418 = vmatpush.msra.mxu0 %v373
    %419 = vmatpush.msra.mxu0 %v372
    %420 = vmatpush.msra.mxu0 %v371
    %421 = vmatpush.msra.mxu0 %v370
    %422 = vmatpush.msra.mxu0 %v369
    %423 = vmatpush.msra.mxu0 %v368
    %424 = vmatpush.msra.mxu0 %v367
    %425 = vmatpush.msra.mxu0 %v366
    %426 = vmatpush.msra.mxu0 %v365
    %427 = vmatpush.msra.mxu0 %v364
    %428 = vmatpush.msra.mxu0 %v363
    %429 = vmatpush.msra.mxu0 %v362
    %430 = vmatmul.f32.gmra.mxu0 %v361
    %v431 = vpop.f32.mrf.mxu0
    %v432 = vadd.f32 %v412, %v431
    %433 = vdwg.mxu0
    %434 = vmatpush.msra.mxu0 %v393
    %435 = vmatpush.msra.mxu0 %v392
    %436 = vmatpush.msra.mxu0 %v391
    %437 = vmatpush.msra.mxu0 %v390
    %438 = vmatpush.msra.mxu0 %v389
    %439 = vmatpush.msra.mxu0 %v388
    %440 = vmatpush.msra.mxu0 %v387
    %441 = vmatpush.msra.mxu0 %v386
    %442 = vmatpush.msra.mxu0 %v385
    %443 = vmatpush.msra.mxu0 %v384
    %444 = vmatpush.msra.mxu0 %v383
    %445 = vmatpush.msra.mxu0 %v382
    %446 = vmatpush.msra.mxu0 %v381
    %447 = vmatpush.msra.mxu0 %v380
    %448 = vmatpush.msra.mxu0 %v379
    %449 = vmatpush.msra.mxu0 %v378
    %450 = vmatmul.f32.gmra.mxu0 %v359
    %v451 = vpop.f32.mrf.mxu0
    %v452 = vadd.f32 %v432, %v451
    %453 = vdwg.mxu0
    %454 = vmatpush.msra.mxu0 %v409
    %455 = vmatpush.msra.mxu0 %v408
    %456 = vmatpush.msra.mxu0 %v407
    %457 = vmatpush.msra.mxu0 %v406
    %458 = vmatpush.msra.mxu0 %v405
    %459 = vmatpush.msra.mxu0 %v404
    %460 = vmatpush.msra.mxu0 %v403
    %461 = vmatpush.msra.mxu0 %v402
    %462 = vmatpush.msra.mxu0 %v401
    %463 = vmatpush.msra.mxu0 %v400
    %464 = vmatpush.msra.mxu0 %v399
    %465 = vmatpush.msra.mxu0 %v398
    %466 = vmatpush.msra.mxu0 %v397
    %467 = vmatpush.msra.mxu0 %v396
    %468 = vmatpush.msra.mxu0 %v395
    %469 = vmatpush.msra.mxu0 %v394
    %470 = vmatmul.f32.gmra.mxu0 %v241
    %v471 = vpop.f32.mrf.mxu0
    %v472 = vadd.f32 %v452, %v471
    %473 = vdwg.mxu0
    %v474 = vmax.f32 %v472, 0.0
    %s475 = scalar_lea.vmem [#allocation6], 384
    %v476 = vld [vmem:[%s475] sm:$0xff]
    %v477 = vld [vmem:[%s475 + $0x8] sm:$0xff]
    %v478 = vld [vmem:[%s475 + $0x10] sm:$0xff]
    %v479 = vld [vmem:[%s475 + $0x18] sm:$0xff]
    %v480 = vld [vmem:[%s475 + $0x20] sm:$0xff]
    %v481 = vld [vmem:[%s475 + $0x28] sm:$0xff]
    %v482 = vld [vmem:[%s475 + $0x30] sm:$0xff]
    %v483 = vld [vmem:[%s475 + $0x38] sm:$0xff]
    %v484 = vld [vmem:[%s475 + $0x40] sm:$0xff]
    %v485 = vld [vmem:[%s475 + $0x48] sm:$0xff]
    %v486 = vld [vmem:[%s475 + $0x50] sm:$0xff]
    %v487 = vld [vmem:[%s475 + $0x58] sm:$0xff]
    %v488 = vld [vmem:[%s475 + $0x60] sm:$0xff]
    %v489 = vld [vmem:[%s475 + $0x68] sm:$0xff]
    %v490 = vld [vmem:[%s475 + $0x70] sm:$0xff]
    %v491 = vld [vmem:[%s475 + $0x78] sm:$0xff]
    %v492 = vld [vmem:[%s475 + $0x80] sm:$0xff]
    %v493 = vld [vmem:[%s475 + $0x88] sm:$0xff]
    %v494 = vld [vmem:[%s475 + $0x90] sm:$0xff]
    %v495 = vld [vmem:[%s475 + $0x98] sm:$0xff]
    %v496 = vld [vmem:[%s475 + $0xa0] sm:$0xff]
    %v497 = vld [vmem:[%s475 + $0xa8] sm:$0xff]
    %v498 = vld [vmem:[%s475 + $0xb0] sm:$0xff]
    %v499 = vld [vmem:[%s475 + $0xb8] sm:$0xff]
    %v500 = vld [vmem:[%s475 + $0xc0] sm:$0xff]
    %v501 = vld [vmem:[%s475 + $0xc8] sm:$0xff]
    %v502 = vld [vmem:[%s475 + $0xd0] sm:$0xff]
    %v503 = vld [vmem:[%s475 + $0xd8] sm:$0xff]
    %v504 = vld [vmem:[%s475 + $0xe0] sm:$0xff]
    %v505 = vld [vmem:[%s475 + $0xe8] sm:$0xff]
    %v506 = vld [vmem:[%s475 + $0xf0] sm:$0xff]
    %v507 = vld [vmem:[%s475 + $0xf8] sm:$0xff]
    %v508 = vld [vmem:[%s475 + $0x100] sm:$0xff]
    %v509 = vld [vmem:[%s475 + $0x108] sm:$0xff]
    %v510 = vld [vmem:[%s475 + $0x110] sm:$0xff]
    %v511 = vld [vmem:[%s475 + $0x118] sm:$0xff]
    %v512 = vld [vmem:[%s475 + $0x120] sm:$0xff]
    %v513 = vld [vmem:[%s475 + $0x128] sm:$0xff]
    %v514 = vld [vmem:[%s475 + $0x130] sm:$0xff]
    %v515 = vld [vmem:[%s475 + $0x138] sm:$0xff]
    %v516 = vld [vmem:[%s475 + $0x140] sm:$0xff]
    %v517 = vld [vmem:[%s475 + $0x148] sm:$0xff]
    %v518 = vld [vmem:[%s475 + $0x150] sm:$0xff]
    %v519 = vld [vmem:[%s475 + $0x158] sm:$0xff]
    %v520 = vld [vmem:[%s475 + $0x160] sm:$0xff]
    %v521 = vld [vmem:[%s475 + $0x168] sm:$0xff]
    %v522 = vld [vmem:[%s475 + $0x170] sm:$0xff]
    %v523 = vld [vmem:[%s475 + $0x178] sm:$0xff]
    %s524 = scalar_lea.vmem %s4, 3
    %v525 = vld [vmem:[%s524] sm:$0x7]
    %v527 = vperm.slane %v525, 0
    %v528 = vperm.slane %v525, 1
    %v529 = vperm.slane %v525, 2
    %533 = vmatpush.msra.mxu0 %v521
    %534 = vmatpush.msra.mxu0 %v518
    %535 = vmatpush.msra.mxu0 %v515
    %536 = vmatpush.msra.mxu0 %v512
    %537 = vmatpush.msra.mxu0 %v509
    %538 = vmatpush.msra.mxu0 %v506
    %539 = vmatpush.msra.mxu0 %v503
    %540 = vmatpush.msra.mxu0 %v500
    %541 = vmatpush.msra.mxu0 %v497
    %542 = vmatpush.msra.mxu0 %v494
    %543 = vmatpush.msra.mxu0 %v491
    %544 = vmatpush.msra.mxu0 %v488
    %545 = vmatpush.msra.mxu0 %v485
    %546 = vmatpush.msra.mxu0 %v482
    %547 = vmatpush.msra.mxu0 %v479
    %548 = vmatpush.msra.mxu0 %v476
    %549 = vmatmul.f32.gmra.mxu0 %v360
    %v550 = vpop.f32.mrf.mxu0
    %v551 = vadd.f32 %v527, %v550
    %552 = vdwg.mxu0
    %553 = vmatpush.msra.mxu0 %v522
    %554 = vmatpush.msra.mxu0 %v519
    %555 = vmatpush.msra.mxu0 %v516
    %556 = vmatpush.msra.mxu0 %v513
    %557 = vmatpush.msra.mxu0 %v510
    %558 = vmatpush.msra.mxu0 %v507
    %559 = vmatpush.msra.mxu0 %v504
    %560 = vmatpush.msra.mxu0 %v501
    %561 = vmatpush.msra.mxu0 %v498
    %562 = vmatpush.msra.mxu0 %v495
    %563 = vmatpush.msra.mxu0 %v492
    %564 = vmatpush.msra.mxu0 %v489
    %565 = vmatpush.msra.mxu0 %v486
    %566 = vmatpush.msra.mxu0 %v483
    %567 = vmatpush.msra.mxu0 %v480
    %568 = vmatpush.msra.mxu0 %v477
    %569 = vmatmul.f32.gmra.mxu0 %v360
    %v570 = vpop.f32.mrf.mxu0
    %v571 = vadd.f32 %v528, %v570
    %572 = vdwg.mxu0
    %573 = vmatpush.msra.mxu0 %v523
    %574 = vmatpush.msra.mxu0 %v520
    %575 = vmatpush.msra.mxu0 %v517
    %576 = vmatpush.msra.mxu0 %v514
    %577 = vmatpush.msra.mxu0 %v511
    %578 = vmatpush.msra.mxu0 %v508
    %579 = vmatpush.msra.mxu0 %v505
    %580 = vmatpush.msra.mxu0 %v502
    %581 = vmatpush.msra.mxu0 %v499
    %582 = vmatpush.msra.mxu0 %v496
    %583 = vmatpush.msra.mxu0 %v493
    %584 = vmatpush.msra.mxu0 %v490
    %585 = vmatpush.msra.mxu0 %v487
    %586 = vmatpush.msra.mxu0 %v484
    %587 = vmatpush.msra.mxu0 %v481
    %588 = vmatpush.msra.mxu0 %v478
    %589 = vmatmul.f32.gmra.mxu0 %v360
    %v590 = vpop.f32.mrf.mxu0
    %v591 = vadd.f32 %v529, %v590
    %592 = vdwg.mxu0
    %v593 = vmax.f32 %v551, 0.0
    %v594 = vmul.f32 %v88, %v571
    %v595 = vmax.f32 %v591, 0.0
    %v596 = vmul.f32 %v474, %v593
    %s597 = scalar_lea.vmem [#allocation8], 384
    %v598 = vld [vmem:[%s597] sm:$0xff]
    %v599 = vld [vmem:[%s597 + $0x8] sm:$0xff]
    %v600 = vld [vmem:[%s597 + $0x10] sm:$0xff]
    %v601 = vld [vmem:[%s597 + $0x18] sm:$0xff]
    %v602 = vld [vmem:[%s597 + $0x20] sm:$0xff]
    %v603 = vld [vmem:[%s597 + $0x28] sm:$0xff]
    %v604 = vld [vmem:[%s597 + $0x30] sm:$0xff]
    %v605 = vld [vmem:[%s597 + $0x38] sm:$0xff]
    %v606 = vld [vmem:[%s597 + $0x40] sm:$0xff]
    %v607 = vld [vmem:[%s597 + $0x48] sm:$0xff]
    %v608 = vld [vmem:[%s597 + $0x50] sm:$0xff]
    %v609 = vld [vmem:[%s597 + $0x58] sm:$0xff]
    %v610 = vld [vmem:[%s597 + $0x60] sm:$0xff]
    %v611 = vld [vmem:[%s597 + $0x68] sm:$0xff]
    %v612 = vld [vmem:[%s597 + $0x70] sm:$0xff]
    %v613 = vld [vmem:[%s597 + $0x78] sm:$0xff]
    %v614 = vld [vmem:[%s597 + $0x80] sm:$0xff]
    %v615 = vld [vmem:[%s597 + $0x88] sm:$0xff]
    %v616 = vld [vmem:[%s597 + $0x90] sm:$0xff]
    %v617 = vld [vmem:[%s597 + $0x98] sm:$0xff]
    %v618 = vld [vmem:[%s597 + $0xa0] sm:$0xff]
    %v619 = vld [vmem:[%s597 + $0xa8] sm:$0xff]
    %v620 = vld [vmem:[%s597 + $0xb0] sm:$0xff]
    %v621 = vld [vmem:[%s597 + $0xb8] sm:$0xff]
    %v622 = vld [vmem:[%s597 + $0xc0] sm:$0xff]
    %v623 = vld [vmem:[%s597 + $0xc8] sm:$0xff]
    %v624 = vld [vmem:[%s597 + $0xd0] sm:$0xff]
    %v625 = vld [vmem:[%s597 + $0xd8] sm:$0xff]
    %v626 = vld [vmem:[%s597 + $0xe0] sm:$0xff]
    %v627 = vld [vmem:[%s597 + $0xe8] sm:$0xff]
    %v628 = vld [vmem:[%s597 + $0xf0] sm:$0xff]
    %v629 = vld [vmem:[%s597 + $0xf8] sm:$0xff]
    %v630 = vld [vmem:[%s597 + $0x100] sm:$0xff]
    %v631 = vld [vmem:[%s597 + $0x108] sm:$0xff]
    %v632 = vld [vmem:[%s597 + $0x110] sm:$0xff]
    %v633 = vld [vmem:[%s597 + $0x118] sm:$0xff]
    %v634 = vld [vmem:[%s597 + $0x120] sm:$0xff]
    %v635 = vld [vmem:[%s597 + $0x128] sm:$0xff]
    %v636 = vld [vmem:[%s597 + $0x130] sm:$0xff]
    %v637 = vld [vmem:[%s597 + $0x138] sm:$0xff]
    %v638 = vld [vmem:[%s597 + $0x140] sm:$0xff]
    %v639 = vld [vmem:[%s597 + $0x148] sm:$0xff]
    %v640 = vld [vmem:[%s597 + $0x150] sm:$0xff]
    %v641 = vld [vmem:[%s597 + $0x158] sm:$0xff]
    %v642 = vld [vmem:[%s597 + $0x160] sm:$0xff]
    %v643 = vld [vmem:[%s597 + $0x168] sm:$0xff]
    %v644 = vld [vmem:[%s597 + $0x170] sm:$0xff]
    %v645 = vld [vmem:[%s597 + $0x178] sm:$0xff]
    %s646 = scalar_lea.vmem %s6, 1
    %v647 = vld [vmem:[%s646] sm:$0x1]
    %v649 = vperm.slane %v647, 0
    %651 = vmatpush.msra.mxu0 %v613
    %652 = vmatpush.msra.mxu0 %v612
    %653 = vmatpush.msra.mxu0 %v611
    %654 = vmatpush.msra.mxu0 %v610
    %655 = vmatpush.msra.mxu0 %v609
    %656 = vmatpush.msra.mxu0 %v608
    %657 = vmatpush.msra.mxu0 %v607
    %658 = vmatpush.msra.mxu0 %v606
    %659 = vmatpush.msra.mxu0 %v605
    %660 = vmatpush.msra.mxu0 %v604
    %661 = vmatpush.msra.mxu0 %v603
    %662 = vmatpush.msra.mxu0 %v602
    %663 = vmatpush.msra.mxu0 %v601
    %664 = vmatpush.msra.mxu0 %v600
    %665 = vmatpush.msra.mxu0 %v599
    %666 = vmatpush.msra.mxu0 %v598
    %667 = vmatmul.f32.gmra.mxu0 %v596
    %v668 = vpop.f32.mrf.mxu0
    %v669 = vadd.f32 %v649, %v668
    %670 = vdwg.mxu0
    %671 = vmatpush.msra.mxu0 %v629
    %672 = vmatpush.msra.mxu0 %v628
    %673 = vmatpush.msra.mxu0 %v627
    %674 = vmatpush.msra.mxu0 %v626
    %675 = vmatpush.msra.mxu0 %v625
    %676 = vmatpush.msra.mxu0 %v624
    %677 = vmatpush.msra.mxu0 %v623
    %678 = vmatpush.msra.mxu0 %v622
    %679 = vmatpush.msra.mxu0 %v621
    %680 = vmatpush.msra.mxu0 %v620
    %681 = vmatpush.msra.mxu0 %v619
    %682 = vmatpush.msra.mxu0 %v618
    %683 = vmatpush.msra.mxu0 %v617
    %684 = vmatpush.msra.mxu0 %v616
    %685 = vmatpush.msra.mxu0 %v615
    %686 = vmatpush.msra.mxu0 %v614
    %687 = vmatmul.f32.gmra.mxu0 %v594
    %v688 = vpop.f32.mrf.mxu0
    %v689 = vadd.f32 %v669, %v688
    %690 = vdwg.mxu0
    %691 = vmatpush.msra.mxu0 %v645
    %692 = vmatpush.msra.mxu0 %v644
    %693 = vmatpush.msra.mxu0 %v643
    %694 = vmatpush.msra.mxu0 %v642
    %695 = vmatpush.msra.mxu0 %v641
    %696 = vmatpush.msra.mxu0 %v640
    %697 = vmatpush.msra.mxu0 %v639
    %698 = vmatpush.msra.mxu0 %v638
    %699 = vmatpush.msra.mxu0 %v637
    %700 = vmatpush.msra.mxu0 %v636
    %701 = vmatpush.msra.mxu0 %v635
    %702 = vmatpush.msra.mxu0 %v634
    %703 = vmatpush.msra.mxu0 %v633
    %704 = vmatpush.msra.mxu0 %v632
    %705 = vmatpush.msra.mxu0 %v631
    %706 = vmatpush.msra.mxu0 %v630
    %707 = vmatmul.f32.gmra.mxu0 %v360
    %v708 = vpop.f32.mrf.mxu0
    %v709 = vadd.f32 %v689, %v708
    %710 = vdwg.mxu0
    %v711 = vmax.f32 %v709, 0.0
    %v712 = vld [vmem:[%s7] sm:$0xff]
    %v713 = vld [vmem:[%s7 + $0x8] sm:$0xff]
    %v714 = vld [vmem:[%s7 + $0x10] sm:$0xff]
    %v715 = vld [vmem:[%s7 + $0x18] sm:$0xff]
    %v716 = vld [vmem:[%s7 + $0x20] sm:$0xff]
    %v717 = vld [vmem:[%s7 + $0x28] sm:$0xff]
    %v718 = vld [vmem:[%s7 + $0x30] sm:$0xff]
    %v719 = vld [vmem:[%s7 + $0x38] sm:$0xff]
    %v720 = vld [vmem:[%s7 + $0x40] sm:$0xff]
    %v721 = vld [vmem:[%s7 + $0x48] sm:$0xff]
    %v722 = vld [vmem:[%s7 + $0x50] sm:$0xff]
    %v723 = vld [vmem:[%s7 + $0x58] sm:$0xff]
    %v724 = vld [vmem:[%s7 + $0x60] sm:$0xff]
    %v725 = vld [vmem:[%s7 + $0x68] sm:$0xff]
    %v726 = vld [vmem:[%s7 + $0x70] sm:$0xff]
    %v727 = vld [vmem:[%s7 + $0x78] sm:$0xff]
    %v728 = vld [vmem:[%s7 + $0x80] sm:$0xff]
    %v729 = vld [vmem:[%s7 + $0x88] sm:$0xff]
    %v730 = vld [vmem:[%s7 + $0x90] sm:$0xff]
    %v731 = vld [vmem:[%s7 + $0x98] sm:$0xff]
    %v732 = vld [vmem:[%s7 + $0xa0] sm:$0xff]
    %v733 = vld [vmem:[%s7 + $0xa8] sm:$0xff]
    %v734 = vld [vmem:[%s7 + $0xb0] sm:$0xff]
    %v735 = vld [vmem:[%s7 + $0xb8] sm:$0xff]
    %v736 = vld [vmem:[%s7 + $0xc0] sm:$0xff]
    %v737 = vld [vmem:[%s7 + $0xc8] sm:$0xff]
    %v738 = vld [vmem:[%s7 + $0xd0] sm:$0xff]
    %v739 = vld [vmem:[%s7 + $0xd8] sm:$0xff]
    %v740 = vld [vmem:[%s7 + $0xe0] sm:$0xff]
    %v741 = vld [vmem:[%s7 + $0xe8] sm:$0xff]
    %v742 = vld [vmem:[%s7 + $0xf0] sm:$0xff]
    %v743 = vld [vmem:[%s7 + $0xf8] sm:$0xff]
    %v744 = vld [vmem:[%s8] sm:$0x3]
    %v746 = vperm.slane %v744, 0
    %v747 = vperm.slane %v744, 1
    %750 = vmatpush.msra.mxu0 %v742
    %751 = vmatpush.msra.mxu0 %v740
    %752 = vmatpush.msra.mxu0 %v738
    %753 = vmatpush.msra.mxu0 %v736
    %754 = vmatpush.msra.mxu0 %v734
    %755 = vmatpush.msra.mxu0 %v732
    %756 = vmatpush.msra.mxu0 %v730
    %757 = vmatpush.msra.mxu0 %v728
    %758 = vmatpush.msra.mxu0 %v726
    %759 = vmatpush.msra.mxu0 %v724
    %760 = vmatpush.msra.mxu0 %v722
    %761 = vmatpush.msra.mxu0 %v720
    %762 = vmatpush.msra.mxu0 %v718
    %763 = vmatpush.msra.mxu0 %v716
    %764 = vmatpush.msra.mxu0 %v714
    %765 = vmatpush.msra.mxu0 %v712
    %766 = vmatmul.f32.gmra.mxu0 %v595
    %v767 = vpop.f32.mrf.mxu0
    %v768 = vadd.f32 %v746, %v767
    %769 = vdwg.mxu0
    %770 = vmatpush.msra.mxu0 %v743
    %771 = vmatpush.msra.mxu0 %v741
    %772 = vmatpush.msra.mxu0 %v739
    %773 = vmatpush.msra.mxu0 %v737
    %774 = vmatpush.msra.mxu0 %v735
    %775 = vmatpush.msra.mxu0 %v733
    %776 = vmatpush.msra.mxu0 %v731
    %777 = vmatpush.msra.mxu0 %v729
    %778 = vmatpush.msra.mxu0 %v727
    %779 = vmatpush.msra.mxu0 %v725
    %780 = vmatpush.msra.mxu0 %v723
    %781 = vmatpush.msra.mxu0 %v721
    %782 = vmatpush.msra.mxu0 %v719
    %783 = vmatpush.msra.mxu0 %v717
    %784 = vmatpush.msra.mxu0 %v715
    %785 = vmatpush.msra.mxu0 %v713
    %786 = vmatmul.f32.gmra.mxu0 %v595
    %v787 = vpop.f32.mrf.mxu0
    %v788 = vadd.f32 %v747, %v787
    %789 = vdwg.mxu0
    %v790 = vmax.f32 %v768, 0.0
    %v791 = vmul.f32 %v88, %v788
    %v792 = vmul.f32 %v711, %v790
    %v793 = vld [vmem:[%s9] sm:$0xff]
    %v794 = vld [vmem:[%s9 + $0x8] sm:$0xff]
    %v795 = vld [vmem:[%s9 + $0x10] sm:$0xff]
    %v796 = vld [vmem:[%s9 + $0x18] sm:$0xff]
    %v797 = vld [vmem:[%s9 + $0x20] sm:$0xff]
    %v798 = vld [vmem:[%s9 + $0x28] sm:$0xff]
    %v799 = vld [vmem:[%s9 + $0x30] sm:$0xff]
    %v800 = vld [vmem:[%s9 + $0x38] sm:$0xff]
    %v801 = vld [vmem:[%s9 + $0x40] sm:$0xff]
    %v802 = vld [vmem:[%s9 + $0x48] sm:$0xff]
    %v803 = vld [vmem:[%s9 + $0x50] sm:$0xff]
    %v804 = vld [vmem:[%s9 + $0x58] sm:$0xff]
    %v805 = vld [vmem:[%s9 + $0x60] sm:$0xff]
    %v806 = vld [vmem:[%s9 + $0x68] sm:$0xff]
    %v807 = vld [vmem:[%s9 + $0x70] sm:$0xff]
    %v808 = vld [vmem:[%s9 + $0x78] sm:$0xff]
    %v809 = vld [vmem:[%s9 + $0x80] sm:$0xff]
    %v810 = vld [vmem:[%s9 + $0x88] sm:$0xff]
    %v811 = vld [vmem:[%s9 + $0x90] sm:$0xff]
    %v812 = vld [vmem:[%s9 + $0x98] sm:$0xff]
    %v813 = vld [vmem:[%s9 + $0xa0] sm:$0xff]
    %v814 = vld [vmem:[%s9 + $0xa8] sm:$0xff]
    %v815 = vld [vmem:[%s9 + $0xb0] sm:$0xff]
    %v816 = vld [vmem:[%s9 + $0xb8] sm:$0xff]
    %v817 = vld [vmem:[%s9 + $0xc0] sm:$0xff]
    %v818 = vld [vmem:[%s9 + $0xc8] sm:$0xff]
    %v819 = vld [vmem:[%s9 + $0xd0] sm:$0xff]
    %v820 = vld [vmem:[%s9 + $0xd8] sm:$0xff]
    %v821 = vld [vmem:[%s9 + $0xe0] sm:$0xff]
    %v822 = vld [vmem:[%s9 + $0xe8] sm:$0xff]
    %v823 = vld [vmem:[%s9 + $0xf0] sm:$0xff]
    %v824 = vld [vmem:[%s9 + $0xf8] sm:$0xff]
    %v825 = vld [vmem:[%s9 + $0x100] sm:$0xff]
    %v826 = vld [vmem:[%s9 + $0x108] sm:$0xff]
    %v827 = vld [vmem:[%s9 + $0x110] sm:$0xff]
    %v828 = vld [vmem:[%s9 + $0x118] sm:$0xff]
    %v829 = vld [vmem:[%s9 + $0x120] sm:$0xff]
    %v830 = vld [vmem:[%s9 + $0x128] sm:$0xff]
    %v831 = vld [vmem:[%s9 + $0x130] sm:$0xff]
    %v832 = vld [vmem:[%s9 + $0x138] sm:$0xff]
    %v833 = vld [vmem:[%s9 + $0x140] sm:$0xff]
    %v834 = vld [vmem:[%s9 + $0x148] sm:$0xff]
    %v835 = vld [vmem:[%s9 + $0x150] sm:$0xff]
    %v836 = vld [vmem:[%s9 + $0x158] sm:$0xff]
    %v837 = vld [vmem:[%s9 + $0x160] sm:$0xff]
    %v838 = vld [vmem:[%s9 + $0x168] sm:$0xff]
    %v839 = vld [vmem:[%s9 + $0x170] sm:$0xff]
    %v840 = vld [vmem:[%s9 + $0x178] sm:$0xff]
    %v841 = vld [vmem:[#allocation2] sm:$0x1]
    %v843 = vperm.slane %v841, 0
    %845 = vmatpush.msra.mxu0 %v808
    %846 = vmatpush.msra.mxu0 %v807
    %847 = vmatpush.msra.mxu0 %v806
    %848 = vmatpush.msra.mxu0 %v805
    %849 = vmatpush.msra.mxu0 %v804
    %850 = vmatpush.msra.mxu0 %v803
    %851 = vmatpush.msra.mxu0 %v802
    %852 = vmatpush.msra.mxu0 %v801
    %853 = vmatpush.msra.mxu0 %v800
    %854 = vmatpush.msra.mxu0 %v799
    %855 = vmatpush.msra.mxu0 %v798
    %856 = vmatpush.msra.mxu0 %v797
    %857 = vmatpush.msra.mxu0 %v796
    %858 = vmatpush.msra.mxu0 %v795
    %859 = vmatpush.msra.mxu0 %v794
    %860 = vmatpush.msra.mxu0 %v793
    %861 = vmatmul.f32.gmra.mxu0 %v792
    %v862 = vpop.f32.mrf.mxu0
    %v863 = vadd.f32 %v843, %v862
    %864 = vdwg.mxu0
    %865 = vmatpush.msra.mxu0 %v824
    %866 = vmatpush.msra.mxu0 %v823
    %867 = vmatpush.msra.mxu0 %v822
    %868 = vmatpush.msra.mxu0 %v821
    %869 = vmatpush.msra.mxu0 %v820
    %870 = vmatpush.msra.mxu0 %v819
    %871 = vmatpush.msra.mxu0 %v818
    %872 = vmatpush.msra.mxu0 %v817
    %873 = vmatpush.msra.mxu0 %v816
    %874 = vmatpush.msra.mxu0 %v815
    %875 = vmatpush.msra.mxu0 %v814
    %876 = vmatpush.msra.mxu0 %v813
    %877 = vmatpush.msra.mxu0 %v812
    %878 = vmatpush.msra.mxu0 %v811
    %879 = vmatpush.msra.mxu0 %v810
    %880 = vmatpush.msra.mxu0 %v809
    %881 = vmatmul.f32.gmra.mxu0 %v791
    %v882 = vpop.f32.mrf.mxu0
    %v883 = vadd.f32 %v863, %v882
    %884 = vdwg.mxu0
    %885 = vmatpush.msra.mxu0 %v840
    %886 = vmatpush.msra.mxu0 %v839
    %887 = vmatpush.msra.mxu0 %v838
    %888 = vmatpush.msra.mxu0 %v837
    %889 = vmatpush.msra.mxu0 %v836
    %890 = vmatpush.msra.mxu0 %v835
    %891 = vmatpush.msra.mxu0 %v834
    %892 = vmatpush.msra.mxu0 %v833
    %893 = vmatpush.msra.mxu0 %v832
    %894 = vmatpush.msra.mxu0 %v831
    %895 = vmatpush.msra.mxu0 %v830
    %896 = vmatpush.msra.mxu0 %v829
    %897 = vmatpush.msra.mxu0 %v828
    %898 = vmatpush.msra.mxu0 %v827
    %899 = vmatpush.msra.mxu0 %v826
    %900 = vmatpush.msra.mxu0 %v825
    %901 = vmatmul.f32.gmra.mxu0 %v595
    %v902 = vpop.f32.mrf.mxu0
    %v903 = vadd.f32 %v883, %v902
    %904 = vdwg.mxu0
    %905 = vxpose.xlu0.b32.start [1/16] %v903, 128
    %906 = vxpose.xlu0.b32.cont [2/16] 0.0, 128
    %907 = vxpose.xlu0.b32.cont [3/16] 0.0, 128
    %908 = vxpose.xlu0.b32.cont [4/16] 0.0, 128
    %909 = vxpose.xlu0.b32.cont [5/16] 0.0, 128
    %910 = vxpose.xlu0.b32.cont [6/16] 0.0, 128
    %911 = vxpose.xlu0.b32.cont [7/16] 0.0, 128
    %912 = vxpose.xlu0.b32.cont [8/16] 0.0, 128
    %913 = vxpose.xlu0.b32.cont [9/16] 0.0, 128
    %914 = vxpose.xlu0.b32.cont [10/16] 0.0, 128
    %915 = vxpose.xlu0.b32.cont [11/16] 0.0, 128
    %916 = vxpose.xlu0.b32.cont [12/16] 0.0, 128
    %917 = vxpose.xlu0.b32.cont [13/16] 0.0, 128
    %918 = vxpose.xlu0.b32.cont [14/16] 0.0, 128
    %919 = vxpose.xlu0.b32.cont [15/16] 0.0, 128
    %920 = vxpose.xlu0.b32.end [16/16] 0.0, 128
    %v921 = vpop.trf.xlu0
    %v922 = vpop.trf.xlu0
    %v923 = vpop.trf.xlu0
    %v924 = vpop.trf.xlu0
    %v925 = vpop.trf.xlu0
    %v926 = vpop.trf.xlu0
    %v927 = vpop.trf.xlu0
    %v928 = vpop.trf.xlu0
    %v929 = vpop.trf.xlu0
    %v930 = vpop.trf.xlu0
    %v931 = vpop.trf.xlu0
    %v932 = vpop.trf.xlu0
    %v933 = vpop.trf.xlu0
    %v934 = vpop.trf.xlu0
    %v935 = vpop.trf.xlu0
    %v936 = vpop.trf.xlu0
    %vm937 = vcmask 57344
    %938 = vst.msk [vmem:[#allocation9] sm:$0x1] %vm937, %v921
    // Predicated region
    $region58: #{tpu_custom_call.1} parent=1 // pred_check
      _
    $region59: #{tpu_custom_call.1} parent=1 // pred_check_branch
      %940 = sbr.rel (0) target = $region61
    $region60: #{tpu_custom_call.1} parent=1 // pred_region
      %942 = vsyncadd [#allocation5], 0
      %s944 = sshll.u32 [#allocation9], 4
      %s945 = int_to_ptr.vmem [resolvable:$true] %s944
      %s946 = sshll.u32 %s11, 4
      %s947 = int_to_ptr.hbm [resolvable:$true] %s946
      %949 = dma.vmem_to_hbm [thread:$0]  %s945, 16, %s947, [#allocation5]
    $region61: #{tpu_custom_call.1} parent=1 // pred_fallthru
      _
    // Predicated region
    $region62: #{tpu_custom_call.1} parent=1 // pred_check
      _
    $region63: #{tpu_custom_call.1} parent=1 // pred_check_branch
      %951 = sbr.rel (0) target = $region65
    $region64: #{tpu_custom_call.1} parent=1 // pred_region
      %953 = dma.done [#allocation5], 16
    $region65: #{tpu_custom_call.1} parent=1 // pred_fallthru
      _
    %954 = vsyncpa [#allocation4], 1
    %955 = vsyncpa [#allocation7], 1
    %956 = vsyncpa [#allocation5], 1

</llo_original>
